<compile_context>
chip_gen: v6e
topology: v6e:2x2x1
jax: 0.10.0
libtpu: 0.0.40
codegen_flags: <defaults>
</compile_context>

<pallas_src>
import jax
import jax.numpy as jnp
from jax import lax
from jax.experimental import pallas as pl
from jax.experimental.pallas import tpu as pltpu


def _pad1_hw(x):
    """Zero-pad a (H, W, C) activation by 1 on both spatial dims (on-chip)."""
    H, W, C = x.shape
    zr = jnp.zeros((1, W, C), x.dtype)
    x = jnp.concatenate([zr, x, zr], axis=0)        # (H+2, W,   C)
    zc = jnp.zeros((H + 2, 1, C), x.dtype)
    return jnp.concatenate([zc, x, zc], axis=1)     # (H+2, W+2, C)


def _conv3x3_bn_relu(xp, w_ref, b_ref, H, W):
    """3x3 conv (stride 1, padding pre-applied) + folded-BN bias + ReLU.

    xp:    (H+2, W+2, C)  padded activation value (VMEM / vregs)
    w_ref: (9*C, Cout)    HWIO taps flattened onto the contraction axis,
                          BN scale already folded in by the wrapper
    b_ref: (1, Cout)      folded BN bias
    returns (H*W, Cout) float32
    """
    C = xp.shape[-1]
    # im2col: gather the 9 taps once, then a single fat MXU matmul (K = 9*C)
    # instead of nine skinny K=C matmuls.
    taps = [xp[dy:dy + H, dx:dx + W, :] for dy in range(3) for dx in range(3)]
    patch = jnp.concatenate(taps, axis=-1).reshape(H * W, 9 * C)
    acc = jnp.dot(patch, w_ref[...], preferred_element_type=jnp.float32)
    return jnp.maximum(acc + b_ref[0, :], 0.0)


def _encoder_block_kernel(x_ref, w1_ref, b1_ref, w2_ref, b2_ref, o_ref):
    """Fused (Conv3x3 + BN + ReLU) x 2 for one batch item, NHWC layout."""
    H, W, Cout = o_ref.shape[1], o_ref.shape[2], o_ref.shape[3]

    x = x_ref[0, :, :, :]                                         # (H, W, Cin)
    # Stage 1: Conv(Cin->Cout) + folded BN + ReLU.
    y1 = _conv3x3_bn_relu(_pad1_hw(x), w1_ref, b1_ref, H, W)
    # Stage-1 activation stays on-chip: no HBM write/read between stages.
    y1 = y1.reshape(H, W, Cout).astype(x.dtype)
    # Stage 2: Conv(Cout->Cout) + folded BN + ReLU.
    y2 = _conv3x3_bn_relu(_pad1_hw(y1), w2_ref, b2_ref, H, W)
    o_ref[0, :, :, :] = y2.reshape(H, W, Cout).astype(o_ref.dtype)


def encoder_block_forward(x_nchw, params):
    """EncoderBlock.forward: x -> block(x).  Input/output are NCHW."""
    x = jnp.transpose(x_nchw, (0, 2, 3, 1))                       # NCHW -> NHWC
    N, H, W, Cin = x.shape
    Cout = params["w1_hwio"].shape[-1]

    # Fold the eval-mode BN scale directly into the conv weights (exact), and
    # flatten the 3x3 taps onto the contraction axis to match the in-kernel
    # im2col column order (dy, dx, cin).
    w1 = (params["w1_hwio"] * params["scale1"][None, None, None, :]
          ).reshape(9 * Cin, Cout).astype(x.dtype)
    w2 = (params["w2_hwio"] * params["scale2"][None, None, None, :]
          ).reshape(9 * Cout, Cout).astype(x.dtype)
    b1 = params["bias1"].reshape(1, Cout).astype(jnp.float32)
    b2 = params["bias2"].reshape(1, Cout).astype(jnp.float32)

    out = pl.pallas_call(
        _encoder_block_kernel,
        out_shape=jax.ShapeDtypeStruct((N, H, W, Cout), x.dtype),
        grid=(N,),
        in_specs=[
            pl.BlockSpec((1, H, W, Cin), lambda n: (n, 0, 0, 0)),
            pl.BlockSpec((9 * Cin, Cout), lambda n: (0, 0)),
            pl.BlockSpec((1, Cout), lambda n: (0, 0)),
            pl.BlockSpec((9 * Cout, Cout), lambda n: (0, 0)),
            pl.BlockSpec((1, Cout), lambda n: (0, 0)),
        ],
        out_specs=pl.BlockSpec((1, H, W, Cout), lambda n: (n, 0, 0, 0)),
        compiler_params=pltpu.CompilerParams(
            dimension_semantics=("parallel",),
            vmem_limit_bytes=32 * 1024 * 1024,
        ),
    )(x, w1, b1, w2, b2)

    return jnp.transpose(out, (0, 3, 1, 2))                       # NHWC -> NCHW


def _fold_bn(gamma, beta, mean, var, eps=1e-5):
    scale = gamma / jnp.sqrt(var + eps)
    bias = beta - mean * scale
    return scale, bias


def _reference_forward(x_nchw, params):
    """Plain-JAX reference (lax.conv) used only to validate the kernel."""
    def conv(x, w_oihw, scale, bias):
        y = lax.conv_general_dilated(
            x, w_oihw, window_strides=(1, 1), padding=((1, 1), (1, 1)),
            dimension_numbers=("NCHW", "OIHW", "NCHW"))
        y = y * scale[None, :, None, None] + bias[None, :, None, None]
        return jnp.maximum(y, 0.0)

    y = conv(x_nchw, params["w1_oihw"], params["scale1"], params["bias1"])
    y = conv(y, params["w2_oihw"], params["scale2"], params["bias2"])
    return y


if __name__ == "__main__":
    key = jax.random.PRNGKey(0)
    N, Cin, H, W = 2, 4, 16, 16
    Cout = 8

    k = jax.random.split(key, 10)
    x = jax.random.normal(k[0], (N, Cin, H, W), dtype=jnp.float32)

    # Conv weights (PyTorch OIHW), BatchNorm params (eval mode).
    w1_oihw = jax.random.normal(k[1], (Cout, Cin, 3, 3), jnp.float32) * 0.1
    w2_oihw = jax.random.normal(k[2], (Cout, Cout, 3, 3), jnp.float32) * 0.1
    g1 = 1.0 + 0.1 * jax.random.normal(k[3], (Cout,), jnp.float32)
    b1 = 0.1 * jax.random.normal(k[4], (Cout,), jnp.float32)
    m1 = 0.1 * jax.random.normal(k[5], (Cout,), jnp.float32)
    v1 = 0.5 + jnp.abs(jax.random.normal(k[6], (Cout,), jnp.float32))
    g2 = 1.0 + 0.1 * jax.random.normal(k[7], (Cout,), jnp.float32)
    b2 = 0.1 * jax.random.normal(k[8], (Cout,), jnp.float32)
    m2 = 0.1 * jax.random.normal(k[9], (Cout,), jnp.float32)
    v2 = 0.5 + jnp.abs(jax.random.normal(k[0], (Cout,), jnp.float32))

    s1, bb1 = _fold_bn(g1, b1, m1, v1)
    s2, bb2 = _fold_bn(g2, b2, m2, v2)

    params = {
        "w1_oihw": w1_oihw,
        "w2_oihw": w2_oihw,
        # kernel wants HWIO (3,3,Cin,Cout)
        "w1_hwio": jnp.transpose(w1_oihw, (2, 3, 1, 0)),
        "w2_hwio": jnp.transpose(w2_oihw, (2, 3, 1, 0)),
        "scale1": s1, "bias1": bb1,
        "scale2": s2, "bias2": bb2,
    }

    out = encoder_block_forward(x, params)
    out = jax.block_until_ready(out)

    ref = _reference_forward(x, params)
    assert out.shape == (N, Cout, H, W), out.shape
    # Tolerance accounts for MXU accumulation-order differences (folded scale,
    # single K=9*Cin contraction) vs. the lax.conv reference.
    assert jnp.allclose(out, ref, rtol=1e-3, atol=1e-3), (
        float(jnp.max(jnp.abs(out - ref))))

    print("KERNEL_OK")
</pallas_src>

<mosaic_0001>
module attributes {stable_mosaic.version = 11 : i64} {
  func.func @_encoder_block_kernel(%arg0: i32, %arg1: memref<1x16x16x4xf32, #tpu.memory_space<vmem>>, %arg2: memref<36x8xf32, #tpu.memory_space<vmem>>, %arg3: memref<1x8xf32, #tpu.memory_space<vmem>>, %arg4: memref<72x8xf32, #tpu.memory_space<vmem>>, %arg5: memref<1x8xf32, #tpu.memory_space<vmem>>, %arg6: memref<1x16x16x8xf32, #tpu.memory_space<vmem>>) attributes {dimension_semantics = [#tpu.dimension_semantics<parallel>], iteration_bounds = array<i64: 2>, scalar_prefetch = 0 : i64, scratch_operands = 0 : i64, tpu.core_type = #tpu.core_type<tc>, window_params = [{transform_indices = @transform_0, window_bounds = array<i64: 1, 16, 16, 4>}, {pipeline_mode = #tpu.pipeline_mode<synchronous>, transform_indices = @transform_1, window_bounds = array<i64: 36, 8>}, {pipeline_mode = #tpu.pipeline_mode<synchronous>, transform_indices = @transform_2, window_bounds = array<i64: 1, 8>}, {pipeline_mode = #tpu.pipeline_mode<synchronous>, transform_indices = @transform_3, window_bounds = array<i64: 72, 8>}, {pipeline_mode = #tpu.pipeline_mode<synchronous>, transform_indices = @transform_4, window_bounds = array<i64: 1, 8>}, {transform_indices = @transform_5, window_bounds = array<i64: 1, 16, 16, 8>}]} {
    %c0 = arith.constant 0 : index
    %c0_0 = arith.constant 0 : index
    %c0_1 = arith.constant 0 : index
    %c0_2 = arith.constant 0 : index
    %0 = vector.load %arg1[%c0, %c0_0, %c0_1, %c0_2] : memref<1x16x16x4xf32, #tpu.memory_space<vmem>>, vector<1x16x16x4xf32>
    %1 = vector.shape_cast %0 : vector<1x16x16x4xf32> to vector<16x16x4xf32>
    %cst = arith.constant 0.000000e+00 : f32
    %2 = vector.broadcast %cst : f32 to vector<1x16x4xf32>
    %3 = tpu.concatenate %2, %1, %2 in 0 : vector<1x16x4xf32>, vector<16x16x4xf32>, vector<1x16x4xf32> -> vector<18x16x4xf32>
    %cst_3 = arith.constant 0.000000e+00 : f32
    %4 = vector.broadcast %cst_3 : f32 to vector<18x1x4xf32>
    %5 = tpu.concatenate %4, %3, %4 in 1 : vector<18x1x4xf32>, vector<18x16x4xf32>, vector<18x1x4xf32> -> vector<18x18x4xf32>
    %6 = vector.extract_strided_slice %5 {offsets = [0, 0, 0], sizes = [16, 16, 4], strides = [1, 1, 1]} : vector<18x18x4xf32> to vector<16x16x4xf32>
    %7 = vector.extract_strided_slice %5 {offsets = [0, 1, 0], sizes = [16, 16, 4], strides = [1, 1, 1]} : vector<18x18x4xf32> to vector<16x16x4xf32>
    %8 = vector.extract_strided_slice %5 {offsets = [0, 2, 0], sizes = [16, 16, 4], strides = [1, 1, 1]} : vector<18x18x4xf32> to vector<16x16x4xf32>
    %9 = vector.extract_strided_slice %5 {offsets = [1, 0, 0], sizes = [16, 16, 4], strides = [1, 1, 1]} : vector<18x18x4xf32> to vector<16x16x4xf32>
    %10 = vector.extract_strided_slice %5 {offsets = [1, 1, 0], sizes = [16, 16, 4], strides = [1, 1, 1]} : vector<18x18x4xf32> to vector<16x16x4xf32>
    %11 = vector.extract_strided_slice %5 {offsets = [1, 2, 0], sizes = [16, 16, 4], strides = [1, 1, 1]} : vector<18x18x4xf32> to vector<16x16x4xf32>
    %12 = vector.extract_strided_slice %5 {offsets = [2, 0, 0], sizes = [16, 16, 4], strides = [1, 1, 1]} : vector<18x18x4xf32> to vector<16x16x4xf32>
    %13 = vector.extract_strided_slice %5 {offsets = [2, 1, 0], sizes = [16, 16, 4], strides = [1, 1, 1]} : vector<18x18x4xf32> to vector<16x16x4xf32>
    %14 = vector.extract_strided_slice %5 {offsets = [2, 2, 0], sizes = [16, 16, 4], strides = [1, 1, 1]} : vector<18x18x4xf32> to vector<16x16x4xf32>
    %15 = tpu.concatenate %6, %7, %8, %9, %10, %11, %12, %13, %14 in 2 : vector<16x16x4xf32>, vector<16x16x4xf32>, vector<16x16x4xf32>, vector<16x16x4xf32>, vector<16x16x4xf32>, vector<16x16x4xf32>, vector<16x16x4xf32>, vector<16x16x4xf32>, vector<16x16x4xf32> -> vector<16x16x36xf32>
    %16 = vector.shape_cast %15 : vector<16x16x36xf32> to vector<256x36xf32>
    %c0_4 = arith.constant 0 : index
    %c0_5 = arith.constant 0 : index
    %17 = vector.load %arg2[%c0_4, %c0_5] : memref<36x8xf32, #tpu.memory_space<vmem>>, vector<36x8xf32>
    %cst_6 = arith.constant dense<0.000000e+00> : vector<256x8xf32>
    %18 = tpu.matmul %16, %17, %cst_6 {dimension_numbers = #tpu.dot_dimension_numbers<[1], [0], [0], [1], [0, 0, 1, 1], [], []>} : vector<256x36xf32>, vector<36x8xf32>, vector<256x8xf32> -> vector<256x8xf32>
    %c0_7 = arith.constant 0 : index
    %c0_8 = arith.constant 0 : index
    %19 = vector.load %arg3[%c0_7, %c0_8] : memref<1x8xf32, #tpu.memory_space<vmem>>, vector<1x8xf32>
    %20 = vector.shape_cast %19 : vector<1x8xf32> to vector<8xf32>
    %21 = vector.shape_cast %20 : vector<8xf32> to vector<1x8xf32>
    %22 = vector.broadcast %21 : vector<1x8xf32> to vector<256x8xf32>
    %23 = arith.addf %18, %22 : vector<256x8xf32>
    %cst_9 = arith.constant 0.000000e+00 : f32
    %24 = vector.broadcast %cst_9 : f32 to vector<256x8xf32>
    %25 = arith.maximumf %23, %24 : vector<256x8xf32>
    %26 = vector.shape_cast %25 : vector<256x8xf32> to vector<16x16x8xf32>
    %cst_10 = arith.constant 0.000000e+00 : f32
    %27 = vector.broadcast %cst_10 : f32 to vector<1x16x8xf32>
    %28 = tpu.concatenate %27, %26, %27 in 0 : vector<1x16x8xf32>, vector<16x16x8xf32>, vector<1x16x8xf32> -> vector<18x16x8xf32>
    %cst_11 = arith.constant 0.000000e+00 : f32
    %29 = vector.broadcast %cst_11 : f32 to vector<18x1x8xf32>
    %30 = tpu.concatenate %29, %28, %29 in 1 : vector<18x1x8xf32>, vector<18x16x8xf32>, vector<18x1x8xf32> -> vector<18x18x8xf32>
    %31 = vector.extract_strided_slice %30 {offsets = [0, 0, 0], sizes = [16, 16, 8], strides = [1, 1, 1]} : vector<18x18x8xf32> to vector<16x16x8xf32>
    %32 = vector.extract_strided_slice %30 {offsets = [0, 1, 0], sizes = [16, 16, 8], strides = [1, 1, 1]} : vector<18x18x8xf32> to vector<16x16x8xf32>
    %33 = vector.extract_strided_slice %30 {offsets = [0, 2, 0], sizes = [16, 16, 8], strides = [1, 1, 1]} : vector<18x18x8xf32> to vector<16x16x8xf32>
    %34 = vector.extract_strided_slice %30 {offsets = [1, 0, 0], sizes = [16, 16, 8], strides = [1, 1, 1]} : vector<18x18x8xf32> to vector<16x16x8xf32>
    %35 = vector.extract_strided_slice %30 {offsets = [1, 1, 0], sizes = [16, 16, 8], strides = [1, 1, 1]} : vector<18x18x8xf32> to vector<16x16x8xf32>
    %36 = vector.extract_strided_slice %30 {offsets = [1, 2, 0], sizes = [16, 16, 8], strides = [1, 1, 1]} : vector<18x18x8xf32> to vector<16x16x8xf32>
    %37 = vector.extract_strided_slice %30 {offsets = [2, 0, 0], sizes = [16, 16, 8], strides = [1, 1, 1]} : vector<18x18x8xf32> to vector<16x16x8xf32>
    %38 = vector.extract_strided_slice %30 {offsets = [2, 1, 0], sizes = [16, 16, 8], strides = [1, 1, 1]} : vector<18x18x8xf32> to vector<16x16x8xf32>
    %39 = vector.extract_strided_slice %30 {offsets = [2, 2, 0], sizes = [16, 16, 8], strides = [1, 1, 1]} : vector<18x18x8xf32> to vector<16x16x8xf32>
    %40 = tpu.concatenate %31, %32, %33, %34, %35, %36, %37, %38, %39 in 2 : vector<16x16x8xf32>, vector<16x16x8xf32>, vector<16x16x8xf32>, vector<16x16x8xf32>, vector<16x16x8xf32>, vector<16x16x8xf32>, vector<16x16x8xf32>, vector<16x16x8xf32>, vector<16x16x8xf32> -> vector<16x16x72xf32>
    %41 = vector.shape_cast %40 : vector<16x16x72xf32> to vector<256x72xf32>
    %c0_12 = arith.constant 0 : index
    %c0_13 = arith.constant 0 : index
    %42 = vector.load %arg4[%c0_12, %c0_13] : memref<72x8xf32, #tpu.memory_space<vmem>>, vector<72x8xf32>
    %cst_14 = arith.constant dense<0.000000e+00> : vector<256x8xf32>
    %43 = tpu.matmul %41, %42, %cst_14 {dimension_numbers = #tpu.dot_dimension_numbers<[1], [0], [0], [1], [0, 0, 1, 1], [], []>} : vector<256x72xf32>, vector<72x8xf32>, vector<256x8xf32> -> vector<256x8xf32>
    %c0_15 = arith.constant 0 : index
    %c0_16 = arith.constant 0 : index
    %44 = vector.load %arg5[%c0_15, %c0_16] : memref<1x8xf32, #tpu.memory_space<vmem>>, vector<1x8xf32>
    %45 = vector.shape_cast %44 : vector<1x8xf32> to vector<8xf32>
    %46 = vector.shape_cast %45 : vector<8xf32> to vector<1x8xf32>
    %47 = vector.broadcast %46 : vector<1x8xf32> to vector<256x8xf32>
    %48 = arith.addf %43, %47 : vector<256x8xf32>
    %cst_17 = arith.constant 0.000000e+00 : f32
    %49 = vector.broadcast %cst_17 : f32 to vector<256x8xf32>
    %50 = arith.maximumf %48, %49 : vector<256x8xf32>
    %51 = vector.shape_cast %50 : vector<256x8xf32> to vector<16x16x8xf32>
    %c0_18 = arith.constant 0 : index
    %c0_19 = arith.constant 0 : index
    %c0_20 = arith.constant 0 : index
    %c0_21 = arith.constant 0 : index
    %52 = vector.load %arg6[%c0_18, %c0_19, %c0_20, %c0_21] : memref<1x16x16x8xf32, #tpu.memory_space<vmem>>, vector<1x16x16x8xf32>
    %53 = vector.shape_cast %52 : vector<1x16x16x8xf32> to vector<16x16x8xf32>
    %54 = vector.shape_cast %51 : vector<16x16x8xf32> to vector<1x16x16x8xf32>
    tpu.vector_store %arg6[%c0_18, %c0_19, %c0_20, %c0_21], %54 {strides = array<i32>} : memref<1x16x16x8xf32, #tpu.memory_space<vmem>>, vector<1x16x16x8xf32>,
    return
  }
  func.func @transform_0(%arg0: i32) -> (i32, i32, i32, i32) {
    %c0_i32 = arith.constant 0 : i32
    %c0_i32_0 = arith.constant 0 : i32
    %c0_i32_1 = arith.constant 0 : i32
    %c0_i32_2 = arith.constant 0 : i32
    return %arg0, %c0_i32, %c0_i32_0, %c0_i32_1 : i32, i32, i32, i32
  }
  func.func @transform_1(%arg0: i32) -> (i32, i32) {
    %c0_i32 = arith.constant 0 : i32
    %c0_i32_0 = arith.constant 0 : i32
    %c0_i32_1 = arith.constant 0 : i32
    return %c0_i32, %c0_i32_0 : i32, i32
  }
  func.func @transform_2(%arg0: i32) -> (i32, i32) {
    %c0_i32 = arith.constant 0 : i32
    %c0_i32_0 = arith.constant 0 : i32
    %c0_i32_1 = arith.constant 0 : i32
    return %c0_i32, %c0_i32_0 : i32, i32
  }
  func.func @transform_3(%arg0: i32) -> (i32, i32) {
    %c0_i32 = arith.constant 0 : i32
    %c0_i32_0 = arith.constant 0 : i32
    %c0_i32_1 = arith.constant 0 : i32
    return %c0_i32, %c0_i32_0 : i32, i32
  }
  func.func @transform_4(%arg0: i32) -> (i32, i32) {
    %c0_i32 = arith.constant 0 : i32
    %c0_i32_0 = arith.constant 0 : i32
    %c0_i32_1 = arith.constant 0 : i32
    return %c0_i32, %c0_i32_0 : i32, i32
  }
  func.func @transform_5(%arg0: i32) -> (i32, i32, i32, i32) {
    %c0_i32 = arith.constant 0 : i32
    %c0_i32_0 = arith.constant 0 : i32
    %c0_i32_1 = arith.constant 0 : i32
    %c0_i32_2 = arith.constant 0 : i32
    return %arg0, %c0_i32, %c0_i32_0, %c0_i32_1 : i32, i32, i32, i32
  }
}

</mosaic_0001>

<llo_original>
// kernel: tpu_custom_call.1
$region0: #{tpu_custom_call.1}
  #allocation0 [shape = 'u32[]', space=smem, size = 0x4, offset = 0x4, fixed_abs, tag = 'smem constant byte address 0x4 - core index']
  #allocation1 [shape = 'u32[144,128]{1,0:T(1,128)}', space=vmem, size = 0x12000, scoped, tag = 'internal scratch']
  %s0 = inlined_call_operand.vmem [shape: f32[2,16,16,4], index: 0, kind: input, shape index: {}]
  %s1 = inlined_call_operand.vmem [shape: f32[36,8], index: 1, kind: input, shape index: {}]
  %s2 = inlined_call_operand.vmem [shape: f32[1,8], index: 2, kind: input, shape index: {}]
  %s3 = inlined_call_operand.vmem [shape: f32[72,8], index: 3, kind: input, shape index: {}]
  %s4 = inlined_call_operand.vmem [shape: f32[1,8], index: 4, kind: input, shape index: {}]
  %s5 = inlined_call_operand.vmem [shape: f32[2,16,16,8], index: 5, kind: output, shape index: {}]
  %s6 = sld [smem:[#allocation0]]
  $region53: #{tpu_custom_call.1} parent=0
    _
  %s8 = ssub.s32 1, %s6
  %s9 = scalar_select 0, %s8, %s6
  loop: start=0, step=1, limit=4
  $region2: #{tpu_custom_call.1} parent=0 // loop_pre_header
    _
  $region3: #{tpu_custom_call.1} parent=0 // loop_header
    %s11 = sphi 0, %s15
    %p12 = scmp.ge.s32.totalorder %s11, 4
    %s21 = sphi 0, %s23
    %s24 = sphi 0, %s21
    %s25 = sphi 0, %s24
    %s41 = sphi 0, %s25
    %s45 = sphi 0, %s45
    %s47 = sphi 0, %s45
    %s48 = sphi 0, %s47
    %s62 = sphi 0, %s48
    %s66 = sphi 0, %s66
    %s68 = sphi 0, %s66
    %s69 = sphi 0, %s68
    %s83 = sphi 0, %s69
    %s87 = sphi 0, %s87
    %s89 = sphi 0, %s87
    %s90 = sphi 0, %s89
    %s104 = sphi 0, %s90
    %s108 = sphi 0, %s108
    %s110 = sphi 0, %s108
    %s111 = sphi 0, %s110
    %s125 = sphi 0, %s111
    %s131 = sphi 0, %s133
    %s134 = sphi 0, %s131
    %s135 = sphi 0, %s134
    %s151 = sphi 0, %s135
  $region4: #{tpu_custom_call.1} parent=0 // loop_header_branch
    %14 = sbr.rel (%p12) target = $region8
  $region5: #{tpu_custom_call.1} parent=0 // loop_body
    %s16 = ssub.s32 %s11, 1
    %s17 = ssub.s32 %s11, 2
    %s18 = sadd.s32 %s11, 1
    %s19 = ssub.s32 %s11, %s18
    %p20 = scmp.eq.s32.totalorder %s19, 0
    %s22 = sadd.s32 %s21, 1
    %s23 = scalar_select %p20, %s21, %s22
    %p26 = pneg %p20
    %p27 = scmp.eq.s32.totalorder %s11, 1
    %p28 = por %p26, %p27
    %p29 = scmp.ne.s32.totalorder %s21, %s24
    %p30 = scmp.eq.s32.totalorder %s11, 0
    %p31 = por %p29, %p30
    %p32 = scmp.ne.s32.totalorder %s21, %s24
    %p33 = scmp.eq.s32.totalorder %s16, 1
    %p34 = por %p32, %p33
    %p35 = scmp.ne.s32.totalorder %s24, %s25
    %p36 = scmp.eq.s32.totalorder %s16, 0
    %p37 = por %p35, %p36
    %p38 = scmp.ne.s32.totalorder %s24, %s25
    %p39 = scmp.eq.s32.totalorder %s17, 1
    %p40 = por %p38, %p39
    %p42 = scmp.ne.s32.totalorder %s25, %s41
    %p43 = scmp.eq.s32.totalorder %s17, 0
    %p44 = por %p42, %p43
    %s46 = sadd.s32 %s45, 1
    %p49 = scmp.eq.s32.totalorder %s11, 1
    %p50 = scmp.ne.s32.totalorder %s45, %s47
    %p51 = scmp.eq.s32.totalorder %s11, 0
    %p52 = por %p50, %p51
    %p53 = scmp.ne.s32.totalorder %s45, %s47
    %p54 = scmp.eq.s32.totalorder %s16, 1
    %p55 = por %p53, %p54
    %p56 = scmp.ne.s32.totalorder %s47, %s48
    %p57 = scmp.eq.s32.totalorder %s16, 0
    %p58 = por %p56, %p57
    %p59 = scmp.ne.s32.totalorder %s47, %s48
    %p60 = scmp.eq.s32.totalorder %s17, 1
    %p61 = por %p59, %p60
    %p63 = scmp.ne.s32.totalorder %s48, %s62
    %p64 = scmp.eq.s32.totalorder %s17, 0
    %p65 = por %p63, %p64
    %s67 = sadd.s32 %s66, 1
    %p70 = scmp.eq.s32.totalorder %s11, 1
    %p71 = scmp.ne.s32.totalorder %s66, %s68
    %p72 = scmp.eq.s32.totalorder %s11, 0
    %p73 = por %p71, %p72
    %p74 = scmp.ne.s32.totalorder %s66, %s68
    %p75 = scmp.eq.s32.totalorder %s16, 1
    %p76 = por %p74, %p75
    %p77 = scmp.ne.s32.totalorder %s68, %s69
    %p78 = scmp.eq.s32.totalorder %s16, 0
    %p79 = por %p77, %p78
    %p80 = scmp.ne.s32.totalorder %s68, %s69
    %p81 = scmp.eq.s32.totalorder %s17, 1
    %p82 = por %p80, %p81
    %p84 = scmp.ne.s32.totalorder %s69, %s83
    %p85 = scmp.eq.s32.totalorder %s17, 0
    %p86 = por %p84, %p85
    %s88 = sadd.s32 %s87, 1
    %p91 = scmp.eq.s32.totalorder %s11, 1
    %p92 = scmp.ne.s32.totalorder %s87, %s89
    %p93 = scmp.eq.s32.totalorder %s11, 0
    %p94 = por %p92, %p93
    %p95 = scmp.ne.s32.totalorder %s87, %s89
    %p96 = scmp.eq.s32.totalorder %s16, 1
    %p97 = por %p95, %p96
    %p98 = scmp.ne.s32.totalorder %s89, %s90
    %p99 = scmp.eq.s32.totalorder %s16, 0
    %p100 = por %p98, %p99
    %p101 = scmp.ne.s32.totalorder %s89, %s90
    %p102 = scmp.eq.s32.totalorder %s17, 1
    %p103 = por %p101, %p102
    %p105 = scmp.ne.s32.totalorder %s90, %s104
    %p106 = scmp.eq.s32.totalorder %s17, 0
    %p107 = por %p105, %p106
    %s109 = sadd.s32 %s108, 1
    %p112 = scmp.eq.s32.totalorder %s11, 1
    %p113 = scmp.ne.s32.totalorder %s108, %s110
    %p114 = scmp.eq.s32.totalorder %s11, 0
    %p115 = por %p113, %p114
    %p116 = scmp.ne.s32.totalorder %s108, %s110
    %p117 = scmp.eq.s32.totalorder %s16, 1
    %p118 = por %p116, %p117
    %p119 = scmp.ne.s32.totalorder %s110, %s111
    %p120 = scmp.eq.s32.totalorder %s16, 0
    %p121 = por %p119, %p120
    %p122 = scmp.ne.s32.totalorder %s110, %s111
    %p123 = scmp.eq.s32.totalorder %s17, 1
    %p124 = por %p122, %p123
    %p126 = scmp.ne.s32.totalorder %s111, %s125
    %p127 = scmp.eq.s32.totalorder %s17, 0
    %p128 = por %p126, %p127
    %s129 = ssub.s32 %s11, %s18
    %p130 = scmp.eq.s32.totalorder %s129, 0
    %s132 = sadd.s32 %s131, 1
    %s133 = scalar_select %p130, %s131, %s132
    %p136 = pneg %p130
    %p137 = scmp.eq.s32.totalorder %s11, 1
    %p138 = por %p136, %p137
    %p139 = scmp.ne.s32.totalorder %s131, %s134
    %p140 = scmp.eq.s32.totalorder %s11, 0
    %p141 = por %p139, %p140
    %p142 = scmp.ne.s32.totalorder %s131, %s134
    %p143 = scmp.eq.s32.totalorder %s16, 1
    %p144 = por %p142, %p143
    %p145 = scmp.ne.s32.totalorder %s134, %s135
    %p146 = scmp.eq.s32.totalorder %s16, 0
    %p147 = por %p145, %p146
    %p148 = scmp.ne.s32.totalorder %s134, %s135
    %p149 = scmp.eq.s32.totalorder %s17, 1
    %p150 = por %p148, %p149
    %p152 = scmp.ne.s32.totalorder %s135, %s151
    %p153 = scmp.eq.s32.totalorder %s17, 0
    %p154 = por %p152, %p153
    %p155 = scmp.le.s32.totalorder 1, %s11
    %p156 = scmp.lt.s32.totalorder %s11, 3
    %p157 = pnand %p155, %p156
    %p158 = pneg %p157
    // Predicated region
    $region9: #{tpu_custom_call.1} parent=5 // pred_check
      _
    $region10: #{tpu_custom_call.1} parent=5 // pred_check_branch
      %160 = sbr.rel (%p157) target = $region12
    $region11: #{tpu_custom_call.1} parent=5 // pred_region
      %s161 = ssub.s32 %s11, 1
      // Predicated region
      $region13: #{tpu_custom_call.1} parent=11 // pred_check
        %p162 = pneg %p58
      $region14: #{tpu_custom_call.1} parent=11 // pred_check_branch
        %164 = sbr.rel (%p162) target = $region16
      $region15: #{tpu_custom_call.1} parent=11 // pred_region
        _
      $region16: #{tpu_custom_call.1} parent=11 // pred_fallthru
        _
      // Predicated region
      $region17: #{tpu_custom_call.1} parent=11 // pred_check
        %p165 = pneg %p79
      $region18: #{tpu_custom_call.1} parent=11 // pred_check_branch
        %167 = sbr.rel (%p165) target = $region20
      $region19: #{tpu_custom_call.1} parent=11 // pred_region
        _
      $region20: #{tpu_custom_call.1} parent=11 // pred_fallthru
        _
      // Predicated region
      $region21: #{tpu_custom_call.1} parent=11 // pred_check
        %p168 = pneg %p100
      $region22: #{tpu_custom_call.1} parent=11 // pred_check_branch
        %170 = sbr.rel (%p168) target = $region24
      $region23: #{tpu_custom_call.1} parent=11 // pred_region
        _
      $region24: #{tpu_custom_call.1} parent=11 // pred_fallthru
        _
      // Predicated region
      $region25: #{tpu_custom_call.1} parent=11 // pred_check
        %p171 = pneg %p121
      $region26: #{tpu_custom_call.1} parent=11 // pred_check_branch
        %173 = sbr.rel (%p171) target = $region28
      $region27: #{tpu_custom_call.1} parent=11 // pred_region
        _
      $region28: #{tpu_custom_call.1} parent=11 // pred_fallthru
        _
    $region12: #{tpu_custom_call.1} parent=5 // pred_fallthru
      _
    %p174 = scmp.lt.s32.totalorder %s11, 2
    // Predicated region
    $region29: #{tpu_custom_call.1} parent=5 // pred_check
      %p175 = pneg %p174
    $region30: #{tpu_custom_call.1} parent=5 // pred_check_branch
      %177 = sbr.rel (%p175) target = $region32
    $region31: #{tpu_custom_call.1} parent=5 // pred_region
      // Predicated region
      $region33: #{tpu_custom_call.1} parent=31 // pred_check
        %p178 = pneg %p31
      $region34: #{tpu_custom_call.1} parent=31 // pred_check_branch
        %180 = sbr.rel (%p178) target = $region36
      $region35: #{tpu_custom_call.1} parent=31 // pred_region
        %p181 = scmp.lt.s32.totalorder %s11, 1
        %s182 = scalar_select %p181, %s11, 1
        %s183 = smul.addr %s182, 32
        %s184 = smul.addr %s183, 8
        %s185 = scalar_lea.vmem %s0, %s184
      $region36: #{tpu_custom_call.1} parent=31 // pred_fallthru
        _
    $region32: #{tpu_custom_call.1} parent=5 // pred_fallthru
      _
    %p186 = scmp.le.s32.totalorder 1, %s11
    %p187 = scmp.lt.s32.totalorder %s11, 3
    %p188 = pnand %p186, %p187
    %p189 = pneg %p188
    // Predicated region
    $region37: #{tpu_custom_call.1} parent=5 // pred_check
      _
    $region38: #{tpu_custom_call.1} parent=5 // pred_check_branch
      %191 = sbr.rel (%p188) target = $region40
    $region39: #{tpu_custom_call.1} parent=5 // pred_region
      %s192 = ssub.s32 %s11, 1
      %p193 = scmp.lt.s32.totalorder %s16, 1
      %s194 = scalar_select %p193, %s16, 1
      %s195 = smul.addr %s194, 32
      %s196 = smul.addr %s195, 8
      %s197 = scalar_lea.vmem %s0, %s196
      %p198 = pneg %p37
      %p199 = pneg %p34
      %p200 = pneg %p58
      %p201 = pneg %p55
      %p202 = pneg %p79
      %p203 = pneg %p76
      %p204 = pneg %p100
      %p205 = pneg %p97
      %p206 = pneg %p121
      %p207 = pneg %p118
      %p208 = pneg %p147
      %p209 = pneg %p144
      %p210 = scmp.lt.s32.totalorder %s16, 1
      %s211 = scalar_select %p210, %s16, 1
      %s212 = smul.addr %s211, 32
      %s213 = smul.addr %s212, 8
      %s214 = scalar_lea.vmem %s5, %s213
      %p215 = scmp.lt.s32.totalorder %s16, 1
      %s216 = scalar_select %p215, %s16, 1
      %s217 = smul.addr %s216, 32
      %s218 = smul.addr %s217, 8
      %s219 = scalar_lea.vmem %s0, %s218
      %p220 = scmp.lt.s32.totalorder %s16, 1
      %s221 = scalar_select %p220, %s16, 1
      %s222 = smul.addr %s221, 32
      %s223 = smul.addr %s222, 8
      %s224 = scalar_lea.vmem %s5, %s223
      %v225 = vld [vmem:[%s219] sm:$0xff]
      %v226 = vld [vmem:[%s219 + $0x8] sm:$0xff]
      %v227 = vld [vmem:[%s219 + $0x10] sm:$0xff]
      %v228 = vld [vmem:[%s219 + $0x18] sm:$0xff]
      %v229 = vld [vmem:[%s219 + $0x20] sm:$0xff]
      %v230 = vld [vmem:[%s219 + $0x28] sm:$0xff]
      %v231 = vld [vmem:[%s219 + $0x30] sm:$0xff]
      %v232 = vld [vmem:[%s219 + $0x38] sm:$0xff]
      %v233 = vld [vmem:[%s219 + $0x40] sm:$0xff]
      %v234 = vld [vmem:[%s219 + $0x48] sm:$0xff]
      %v235 = vld [vmem:[%s219 + $0x50] sm:$0xff]
      %v236 = vld [vmem:[%s219 + $0x58] sm:$0xff]
      %v237 = vld [vmem:[%s219 + $0x60] sm:$0xff]
      %v238 = vld [vmem:[%s219 + $0x68] sm:$0xff]
      %v239 = vld [vmem:[%s219 + $0x70] sm:$0xff]
      %v240 = vld [vmem:[%s219 + $0x78] sm:$0xff]
      %v241 = vld [vmem:[%s219 + $0x80] sm:$0xff]
      %v242 = vld [vmem:[%s219 + $0x88] sm:$0xff]
      %v243 = vld [vmem:[%s219 + $0x90] sm:$0xff]
      %v244 = vld [vmem:[%s219 + $0x98] sm:$0xff]
      %v245 = vld [vmem:[%s219 + $0xa0] sm:$0xff]
      %v246 = vld [vmem:[%s219 + $0xa8] sm:$0xff]
      %v247 = vld [vmem:[%s219 + $0xb0] sm:$0xff]
      %v248 = vld [vmem:[%s219 + $0xb8] sm:$0xff]
      %v249 = vld [vmem:[%s219 + $0xc0] sm:$0xff]
      %v250 = vld [vmem:[%s219 + $0xc8] sm:$0xff]
      %v251 = vld [vmem:[%s219 + $0xd0] sm:$0xff]
      %v252 = vld [vmem:[%s219 + $0xd8] sm:$0xff]
      %v253 = vld [vmem:[%s219 + $0xe0] sm:$0xff]
      %v254 = vld [vmem:[%s219 + $0xe8] sm:$0xff]
      %v255 = vld [vmem:[%s219 + $0xf0] sm:$0xff]
      %v256 = vld [vmem:[%s219 + $0xf8] sm:$0xff]
      %vm290 = vcmask 1040384
      %v291 = vrot.slane 0.0, 7
      %v292 = vsel %vm290, %v291, %v291
      %v293 = vrot.slane %v225, 7
      %v294 = vrot.slane %v226, 7
      %v295 = vsel %vm290, %v293, %v294
      %v296 = vrot.slane %v227, 7
      %v297 = vrot.slane %v228, 7
      %v298 = vsel %vm290, %v296, %v297
      %v299 = vrot.slane %v229, 7
      %v300 = vrot.slane %v230, 7
      %v301 = vsel %vm290, %v299, %v300
      %v302 = vrot.slane %v231, 7
      %v303 = vrot.slane %v232, 7
      %v304 = vsel %vm290, %v302, %v303
      %v305 = vrot.slane %v233, 7
      %v306 = vrot.slane %v234, 7
      %v307 = vsel %vm290, %v305, %v306
      %v308 = vrot.slane %v235, 7
      %v309 = vrot.slane %v236, 7
      %v310 = vsel %vm290, %v308, %v309
      %v311 = vrot.slane %v237, 7
      %v312 = vrot.slane %v238, 7
      %v313 = vsel %vm290, %v311, %v312
      %v314 = vrot.slane %v239, 7
      %v315 = vrot.slane %v240, 7
      %v316 = vsel %vm290, %v314, %v315
      %v317 = vrot.slane %v241, 7
      %v318 = vrot.slane %v242, 7
      %v319 = vsel %vm290, %v317, %v318
      %v320 = vrot.slane %v243, 7
      %v321 = vrot.slane %v244, 7
      %v322 = vsel %vm290, %v320, %v321
      %v323 = vrot.slane %v245, 7
      %v324 = vrot.slane %v246, 7
      %v325 = vsel %vm290, %v323, %v324
      %v326 = vrot.slane %v247, 7
      %v327 = vrot.slane %v248, 7
      %v328 = vsel %vm290, %v326, %v327
      %v329 = vrot.slane %v249, 7
      %v330 = vrot.slane %v250, 7
      %v331 = vsel %vm290, %v329, %v330
      %v332 = vrot.slane %v251, 7
      %v333 = vrot.slane %v252, 7
      %v334 = vsel %vm290, %v332, %v333
      %v335 = vrot.slane %v253, 7
      %v336 = vrot.slane %v254, 7
      %v337 = vsel %vm290, %v335, %v336
      %v338 = vrot.slane %v255, 7
      %v339 = vrot.slane %v256, 7
      %v340 = vsel %vm290, %v338, %v339
      %v390 = vsel %vm290, 0.0, %v291
      %v391 = vsel %vm290, 0.0, %v293
      %v392 = vsel %vm290, 0.0, %v296
      %v393 = vsel %vm290, 0.0, %v299
      %v394 = vsel %vm290, 0.0, %v302
      %v395 = vsel %vm290, 0.0, %v305
      %v396 = vsel %vm290, 0.0, %v308
      %v397 = vsel %vm290, 0.0, %v311
      %v398 = vsel %vm290, 0.0, %v314
      %v399 = vsel %vm290, 0.0, %v317
      %v400 = vsel %vm290, 0.0, %v320
      %v401 = vsel %vm290, 0.0, %v323
      %v402 = vsel %vm290, 0.0, %v326
      %v403 = vsel %vm290, 0.0, %v329
      %v404 = vsel %vm290, 0.0, %v332
      %v405 = vsel %vm290, 0.0, %v335
      %v406 = vsel %vm290, 0.0, %v338
      %v407 = vsel %vm290, %v291, 0.0
      %v408 = vsel %vm290, %v294, 0.0
      %v409 = vsel %vm290, %v297, 0.0
      %v410 = vsel %vm290, %v300, 0.0
      %v411 = vsel %vm290, %v303, 0.0
      %v412 = vsel %vm290, %v306, 0.0
      %v413 = vsel %vm290, %v309, 0.0
      %v414 = vsel %vm290, %v312, 0.0
      %v415 = vsel %vm290, %v315, 0.0
      %v416 = vsel %vm290, %v318, 0.0
      %v417 = vsel %vm290, %v321, 0.0
      %v418 = vsel %vm290, %v324, 0.0
      %v419 = vsel %vm290, %v327, 0.0
      %v420 = vsel %vm290, %v330, 0.0
      %v421 = vsel %vm290, %v333, 0.0
      %v422 = vsel %vm290, %v336, 0.0
      %v423 = vsel %vm290, %v339, 0.0
      %vm456 = vcmask 1046528
      %v457 = vrot.slane %v390, 1
      %v458 = vrot.slane %v292, 1
      %v459 = vsel %vm456, %v457, %v458
      %v460 = vrot.slane %v407, 1
      %v461 = vsel %vm456, %v458, %v460
      %v462 = vrot.slane %v391, 1
      %v463 = vrot.slane %v295, 1
      %v464 = vsel %vm456, %v462, %v463
      %v465 = vrot.slane %v408, 1
      %v466 = vsel %vm456, %v463, %v465
      %v467 = vrot.slane %v392, 1
      %v468 = vrot.slane %v298, 1
      %v469 = vsel %vm456, %v467, %v468
      %v470 = vrot.slane %v409, 1
      %v471 = vsel %vm456, %v468, %v470
      %v472 = vrot.slane %v393, 1
      %v473 = vrot.slane %v301, 1
      %v474 = vsel %vm456, %v472, %v473
      %v475 = vrot.slane %v410, 1
      %v476 = vsel %vm456, %v473, %v475
      %v477 = vrot.slane %v394, 1
      %v478 = vrot.slane %v304, 1
      %v479 = vsel %vm456, %v477, %v478
      %v480 = vrot.slane %v411, 1
      %v481 = vsel %vm456, %v478, %v480
      %v482 = vrot.slane %v395, 1
      %v483 = vrot.slane %v307, 1
      %v484 = vsel %vm456, %v482, %v483
      %v485 = vrot.slane %v412, 1
      %v486 = vsel %vm456, %v483, %v485
      %v487 = vrot.slane %v396, 1
      %v488 = vrot.slane %v310, 1
      %v489 = vsel %vm456, %v487, %v488
      %v490 = vrot.slane %v413, 1
      %v491 = vsel %vm456, %v488, %v490
      %v492 = vrot.slane %v397, 1
      %v493 = vrot.slane %v313, 1
      %v494 = vsel %vm456, %v492, %v493
      %v495 = vrot.slane %v414, 1
      %v496 = vsel %vm456, %v493, %v495
      %v497 = vrot.slane %v398, 1
      %v498 = vrot.slane %v316, 1
      %v499 = vsel %vm456, %v497, %v498
      %v500 = vrot.slane %v415, 1
      %v501 = vsel %vm456, %v498, %v500
      %v502 = vrot.slane %v399, 1
      %v503 = vrot.slane %v319, 1
      %v504 = vsel %vm456, %v502, %v503
      %v505 = vrot.slane %v416, 1
      %v506 = vsel %vm456, %v503, %v505
      %v507 = vrot.slane %v400, 1
      %v508 = vrot.slane %v322, 1
      %v509 = vsel %vm456, %v507, %v508
      %v510 = vrot.slane %v417, 1
      %v511 = vsel %vm456, %v508, %v510
      %v512 = vrot.slane %v401, 1
      %v513 = vrot.slane %v325, 1
      %v514 = vsel %vm456, %v512, %v513
      %v515 = vrot.slane %v418, 1
      %v516 = vsel %vm456, %v513, %v515
      %v517 = vrot.slane %v402, 1
      %v518 = vrot.slane %v328, 1
      %v519 = vsel %vm456, %v517, %v518
      %v520 = vrot.slane %v419, 1
      %v521 = vsel %vm456, %v518, %v520
      %v522 = vrot.slane %v403, 1
      %v523 = vrot.slane %v331, 1
      %v524 = vsel %vm456, %v522, %v523
      %v525 = vrot.slane %v420, 1
      %v526 = vsel %vm456, %v523, %v525
      %v527 = vrot.slane %v404, 1
      %v528 = vrot.slane %v334, 1
      %v529 = vsel %vm456, %v527, %v528
      %v530 = vrot.slane %v421, 1
      %v531 = vsel %vm456, %v528, %v530
      %v532 = vrot.slane %v405, 1
      %v533 = vrot.slane %v337, 1
      %v534 = vsel %vm456, %v532, %v533
      %v535 = vrot.slane %v422, 1
      %v536 = vsel %vm456, %v533, %v535
      %537 = vrot.lane.b32.xlu0 %v459, 4
      %v538 = vpop.permute.xlu0 %537
      %539 = vrot.lane.b32.xlu0 %v461, 4
      %v540 = vpop.permute.xlu0 %539
      %541 = vrot.lane.b32.xlu0 %v464, 4
      %v542 = vpop.permute.xlu0 %541
      %543 = vrot.lane.b32.xlu0 %v466, 4
      %v544 = vpop.permute.xlu0 %543
      %545 = vrot.lane.b32.xlu0 %v469, 4
      %v546 = vpop.permute.xlu0 %545
      %547 = vrot.lane.b32.xlu0 %v471, 4
      %v548 = vpop.permute.xlu0 %547
      %549 = vrot.lane.b32.xlu0 %v474, 4
      %v550 = vpop.permute.xlu0 %549
      %551 = vrot.lane.b32.xlu0 %v476, 4
      %v552 = vpop.permute.xlu0 %551
      %553 = vrot.lane.b32.xlu0 %v479, 4
      %v554 = vpop.permute.xlu0 %553
      %555 = vrot.lane.b32.xlu0 %v481, 4
      %v556 = vpop.permute.xlu0 %555
      %557 = vrot.lane.b32.xlu0 %v484, 4
      %v558 = vpop.permute.xlu0 %557
      %559 = vrot.lane.b32.xlu0 %v486, 4
      %v560 = vpop.permute.xlu0 %559
      %561 = vrot.lane.b32.xlu0 %v489, 4
      %v562 = vpop.permute.xlu0 %561
      %563 = vrot.lane.b32.xlu0 %v491, 4
      %v564 = vpop.permute.xlu0 %563
      %565 = vrot.lane.b32.xlu0 %v494, 4
      %v566 = vpop.permute.xlu0 %565
      %567 = vrot.lane.b32.xlu0 %v496, 4
      %v568 = vpop.permute.xlu0 %567
      %569 = vrot.lane.b32.xlu0 %v499, 4
      %v570 = vpop.permute.xlu0 %569
      %571 = vrot.lane.b32.xlu0 %v501, 4
      %v572 = vpop.permute.xlu0 %571
      %573 = vrot.lane.b32.xlu0 %v504, 4
      %v574 = vpop.permute.xlu0 %573
      %575 = vrot.lane.b32.xlu0 %v506, 4
      %v576 = vpop.permute.xlu0 %575
      %577 = vrot.lane.b32.xlu0 %v509, 4
      %v578 = vpop.permute.xlu0 %577
      %579 = vrot.lane.b32.xlu0 %v511, 4
      %v580 = vpop.permute.xlu0 %579
      %581 = vrot.lane.b32.xlu0 %v514, 4
      %v582 = vpop.permute.xlu0 %581
      %583 = vrot.lane.b32.xlu0 %v516, 4
      %v584 = vpop.permute.xlu0 %583
      %585 = vrot.lane.b32.xlu0 %v519, 4
      %v586 = vpop.permute.xlu0 %585
      %587 = vrot.lane.b32.xlu0 %v521, 4
      %v588 = vpop.permute.xlu0 %587
      %589 = vrot.lane.b32.xlu0 %v524, 4
      %v590 = vpop.permute.xlu0 %589
      %591 = vrot.lane.b32.xlu0 %v526, 4
      %v592 = vpop.permute.xlu0 %591
      %593 = vrot.lane.b32.xlu0 %v529, 4
      %v594 = vpop.permute.xlu0 %593
      %595 = vrot.lane.b32.xlu0 %v531, 4
      %v596 = vpop.permute.xlu0 %595
      %597 = vrot.lane.b32.xlu0 %v534, 4
      %v598 = vpop.permute.xlu0 %597
      %599 = vrot.lane.b32.xlu0 %v536, 4
      %v600 = vpop.permute.xlu0 %599
      %vm633 = vcmask 1045504
      %v634 = vrot.slane %v390, 2
      %v635 = vrot.slane %v292, 2
      %v636 = vsel %vm633, %v634, %v635
      %v637 = vrot.slane %v407, 2
      %v638 = vsel %vm633, %v635, %v637
      %v639 = vrot.slane %v391, 2
      %v640 = vrot.slane %v295, 2
      %v641 = vsel %vm633, %v639, %v640
      %v642 = vrot.slane %v408, 2
      %v643 = vsel %vm633, %v640, %v642
      %v644 = vrot.slane %v392, 2
      %v645 = vrot.slane %v298, 2
      %v646 = vsel %vm633, %v644, %v645
      %v647 = vrot.slane %v409, 2
      %v648 = vsel %vm633, %v645, %v647
      %v649 = vrot.slane %v393, 2
      %v650 = vrot.slane %v301, 2
      %v651 = vsel %vm633, %v649, %v650
      %v652 = vrot.slane %v410, 2
      %v653 = vsel %vm633, %v650, %v652
      %v654 = vrot.slane %v394, 2
      %v655 = vrot.slane %v304, 2
      %v656 = vsel %vm633, %v654, %v655
      %v657 = vrot.slane %v411, 2
      %v658 = vsel %vm633, %v655, %v657
      %v659 = vrot.slane %v395, 2
      %v660 = vrot.slane %v307, 2
      %v661 = vsel %vm633, %v659, %v660
      %v662 = vrot.slane %v412, 2
      %v663 = vsel %vm633, %v660, %v662
      %v664 = vrot.slane %v396, 2
      %v665 = vrot.slane %v310, 2
      %v666 = vsel %vm633, %v664, %v665
      %v667 = vrot.slane %v413, 2
      %v668 = vsel %vm633, %v665, %v667
      %v669 = vrot.slane %v397, 2
      %v670 = vrot.slane %v313, 2
      %v671 = vsel %vm633, %v669, %v670
      %v672 = vrot.slane %v414, 2
      %v673 = vsel %vm633, %v670, %v672
      %v674 = vrot.slane %v398, 2
      %v675 = vrot.slane %v316, 2
      %v676 = vsel %vm633, %v674, %v675
      %v677 = vrot.slane %v415, 2
      %v678 = vsel %vm633, %v675, %v677
      %v679 = vrot.slane %v399, 2
      %v680 = vrot.slane %v319, 2
      %v681 = vsel %vm633, %v679, %v680
      %v682 = vrot.slane %v416, 2
      %v683 = vsel %vm633, %v680, %v682
      %v684 = vrot.slane %v400, 2
      %v685 = vrot.slane %v322, 2
      %v686 = vsel %vm633, %v684, %v685
      %v687 = vrot.slane %v417, 2
      %v688 = vsel %vm633, %v685, %v687
      %v689 = vrot.slane %v401, 2
      %v690 = vrot.slane %v325, 2
      %v691 = vsel %vm633, %v689, %v690
      %v692 = vrot.slane %v418, 2
      %v693 = vsel %vm633, %v690, %v692
      %v694 = vrot.slane %v402, 2
      %v695 = vrot.slane %v328, 2
      %v696 = vsel %vm633, %v694, %v695
      %v697 = vrot.slane %v419, 2
      %v698 = vsel %vm633, %v695, %v697
      %v699 = vrot.slane %v403, 2
      %v700 = vrot.slane %v331, 2
      %v701 = vsel %vm633, %v699, %v700
      %v702 = vrot.slane %v420, 2
      %v703 = vsel %vm633, %v700, %v702
      %v704 = vrot.slane %v404, 2
      %v705 = vrot.slane %v334, 2
      %v706 = vsel %vm633, %v704, %v705
      %v707 = vrot.slane %v421, 2
      %v708 = vsel %vm633, %v705, %v707
      %v709 = vrot.slane %v405, 2
      %v710 = vrot.slane %v337, 2
      %v711 = vsel %vm633, %v709, %v710
      %v712 = vrot.slane %v422, 2
      %v713 = vsel %vm633, %v710, %v712
      %714 = vrot.lane.b32.xlu0 %v636, 8
      %v715 = vpop.permute.xlu0 %714
      %716 = vrot.lane.b32.xlu0 %v638, 8
      %v717 = vpop.permute.xlu0 %716
      %718 = vrot.lane.b32.xlu0 %v641, 8
      %v719 = vpop.permute.xlu0 %718
      %720 = vrot.lane.b32.xlu0 %v643, 8
      %v721 = vpop.permute.xlu0 %720
      %722 = vrot.lane.b32.xlu0 %v646, 8
      %v723 = vpop.permute.xlu0 %722
      %724 = vrot.lane.b32.xlu0 %v648, 8
      %v725 = vpop.permute.xlu0 %724
      %726 = vrot.lane.b32.xlu0 %v651, 8
      %v727 = vpop.permute.xlu0 %726
      %728 = vrot.lane.b32.xlu0 %v653, 8
      %v729 = vpop.permute.xlu0 %728
      %730 = vrot.lane.b32.xlu0 %v656, 8
      %v731 = vpop.permute.xlu0 %730
      %732 = vrot.lane.b32.xlu0 %v658, 8
      %v733 = vpop.permute.xlu0 %732
      %734 = vrot.lane.b32.xlu0 %v661, 8
      %v735 = vpop.permute.xlu0 %734
      %736 = vrot.lane.b32.xlu0 %v663, 8
      %v737 = vpop.permute.xlu0 %736
      %738 = vrot.lane.b32.xlu0 %v666, 8
      %v739 = vpop.permute.xlu0 %738
      %740 = vrot.lane.b32.xlu0 %v668, 8
      %v741 = vpop.permute.xlu0 %740
      %742 = vrot.lane.b32.xlu0 %v671, 8
      %v743 = vpop.permute.xlu0 %742
      %744 = vrot.lane.b32.xlu0 %v673, 8
      %v745 = vpop.permute.xlu0 %744
      %746 = vrot.lane.b32.xlu0 %v676, 8
      %v747 = vpop.permute.xlu0 %746
      %748 = vrot.lane.b32.xlu0 %v678, 8
      %v749 = vpop.permute.xlu0 %748
      %750 = vrot.lane.b32.xlu0 %v681, 8
      %v751 = vpop.permute.xlu0 %750
      %752 = vrot.lane.b32.xlu0 %v683, 8
      %v753 = vpop.permute.xlu0 %752
      %754 = vrot.lane.b32.xlu0 %v686, 8
      %v755 = vpop.permute.xlu0 %754
      %756 = vrot.lane.b32.xlu0 %v688, 8
      %v757 = vpop.permute.xlu0 %756
      %758 = vrot.lane.b32.xlu0 %v691, 8
      %v759 = vpop.permute.xlu0 %758
      %760 = vrot.lane.b32.xlu0 %v693, 8
      %v761 = vpop.permute.xlu0 %760
      %762 = vrot.lane.b32.xlu0 %v696, 8
      %v763 = vpop.permute.xlu0 %762
      %764 = vrot.lane.b32.xlu0 %v698, 8
      %v765 = vpop.permute.xlu0 %764
      %766 = vrot.lane.b32.xlu0 %v701, 8
      %v767 = vpop.permute.xlu0 %766
      %768 = vrot.lane.b32.xlu0 %v703, 8
      %v769 = vpop.permute.xlu0 %768
      %770 = vrot.lane.b32.xlu0 %v706, 8
      %v771 = vpop.permute.xlu0 %770
      %772 = vrot.lane.b32.xlu0 %v708, 8
      %v773 = vpop.permute.xlu0 %772
      %774 = vrot.lane.b32.xlu0 %v711, 8
      %v775 = vpop.permute.xlu0 %774
      %776 = vrot.lane.b32.xlu0 %v713, 8
      %v777 = vpop.permute.xlu0 %776
      %811 = vrot.lane.b32.xlu0 %v391, 12
      %v812 = vpop.permute.xlu0 %811
      %813 = vrot.lane.b32.xlu0 %v295, 12
      %v814 = vpop.permute.xlu0 %813
      %815 = vrot.lane.b32.xlu0 %v392, 12
      %v816 = vpop.permute.xlu0 %815
      %817 = vrot.lane.b32.xlu0 %v298, 12
      %v818 = vpop.permute.xlu0 %817
      %819 = vrot.lane.b32.xlu0 %v393, 12
      %v820 = vpop.permute.xlu0 %819
      %821 = vrot.lane.b32.xlu0 %v301, 12
      %v822 = vpop.permute.xlu0 %821
      %823 = vrot.lane.b32.xlu0 %v394, 12
      %v824 = vpop.permute.xlu0 %823
      %825 = vrot.lane.b32.xlu0 %v304, 12
      %v826 = vpop.permute.xlu0 %825
      %827 = vrot.lane.b32.xlu0 %v395, 12
      %v828 = vpop.permute.xlu0 %827
      %829 = vrot.lane.b32.xlu0 %v307, 12
      %v830 = vpop.permute.xlu0 %829
      %831 = vrot.lane.b32.xlu0 %v396, 12
      %v832 = vpop.permute.xlu0 %831
      %833 = vrot.lane.b32.xlu0 %v310, 12
      %v834 = vpop.permute.xlu0 %833
      %835 = vrot.lane.b32.xlu0 %v397, 12
      %v836 = vpop.permute.xlu0 %835
      %837 = vrot.lane.b32.xlu0 %v313, 12
      %v838 = vpop.permute.xlu0 %837
      %839 = vrot.lane.b32.xlu0 %v398, 12
      %v840 = vpop.permute.xlu0 %839
      %841 = vrot.lane.b32.xlu0 %v316, 12
      %v842 = vpop.permute.xlu0 %841
      %843 = vrot.lane.b32.xlu0 %v399, 12
      %v844 = vpop.permute.xlu0 %843
      %845 = vrot.lane.b32.xlu0 %v319, 12
      %v846 = vpop.permute.xlu0 %845
      %847 = vrot.lane.b32.xlu0 %v400, 12
      %v848 = vpop.permute.xlu0 %847
      %849 = vrot.lane.b32.xlu0 %v322, 12
      %v850 = vpop.permute.xlu0 %849
      %851 = vrot.lane.b32.xlu0 %v401, 12
      %v852 = vpop.permute.xlu0 %851
      %853 = vrot.lane.b32.xlu0 %v325, 12
      %v854 = vpop.permute.xlu0 %853
      %855 = vrot.lane.b32.xlu0 %v402, 12
      %v856 = vpop.permute.xlu0 %855
      %857 = vrot.lane.b32.xlu0 %v328, 12
      %v858 = vpop.permute.xlu0 %857
      %859 = vrot.lane.b32.xlu0 %v403, 12
      %v860 = vpop.permute.xlu0 %859
      %861 = vrot.lane.b32.xlu0 %v331, 12
      %v862 = vpop.permute.xlu0 %861
      %863 = vrot.lane.b32.xlu0 %v404, 12
      %v864 = vpop.permute.xlu0 %863
      %865 = vrot.lane.b32.xlu0 %v334, 12
      %v866 = vpop.permute.xlu0 %865
      %867 = vrot.lane.b32.xlu0 %v405, 12
      %v868 = vpop.permute.xlu0 %867
      %869 = vrot.lane.b32.xlu0 %v337, 12
      %v870 = vpop.permute.xlu0 %869
      %871 = vrot.lane.b32.xlu0 %v406, 12
      %v872 = vpop.permute.xlu0 %871
      %873 = vrot.lane.b32.xlu0 %v340, 12
      %v874 = vpop.permute.xlu0 %873
      %v908 = vrot.slane %v406, 1
      %v909 = vrot.slane %v340, 1
      %v910 = vsel %vm456, %v908, %v909
      %v911 = vrot.slane %v423, 1
      %v912 = vsel %vm456, %v909, %v911
      %913 = vrot.lane.b32.xlu0 %v464, 16
      %v914 = vpop.permute.xlu0 %913
      %915 = vrot.lane.b32.xlu0 %v466, 16
      %v916 = vpop.permute.xlu0 %915
      %917 = vrot.lane.b32.xlu0 %v469, 16
      %v918 = vpop.permute.xlu0 %917
      %919 = vrot.lane.b32.xlu0 %v471, 16
      %v920 = vpop.permute.xlu0 %919
      %921 = vrot.lane.b32.xlu0 %v474, 16
      %v922 = vpop.permute.xlu0 %921
      %923 = vrot.lane.b32.xlu0 %v476, 16
      %v924 = vpop.permute.xlu0 %923
      %925 = vrot.lane.b32.xlu0 %v479, 16
      %v926 = vpop.permute.xlu0 %925
      %927 = vrot.lane.b32.xlu0 %v481, 16
      %v928 = vpop.permute.xlu0 %927
      %929 = vrot.lane.b32.xlu0 %v484, 16
      %v930 = vpop.permute.xlu0 %929
      %931 = vrot.lane.b32.xlu0 %v486, 16
      %v932 = vpop.permute.xlu0 %931
      %933 = vrot.lane.b32.xlu0 %v489, 16
      %v934 = vpop.permute.xlu0 %933
      %935 = vrot.lane.b32.xlu0 %v491, 16
      %v936 = vpop.permute.xlu0 %935
      %937 = vrot.lane.b32.xlu0 %v494, 16
      %v938 = vpop.permute.xlu0 %937
      %939 = vrot.lane.b32.xlu0 %v496, 16
      %v940 = vpop.permute.xlu0 %939
      %941 = vrot.lane.b32.xlu0 %v499, 16
      %v942 = vpop.permute.xlu0 %941
      %943 = vrot.lane.b32.xlu0 %v501, 16
      %v944 = vpop.permute.xlu0 %943
      %945 = vrot.lane.b32.xlu0 %v504, 16
      %v946 = vpop.permute.xlu0 %945
      %947 = vrot.lane.b32.xlu0 %v506, 16
      %v948 = vpop.permute.xlu0 %947
      %949 = vrot.lane.b32.xlu0 %v509, 16
      %v950 = vpop.permute.xlu0 %949
      %951 = vrot.lane.b32.xlu0 %v511, 16
      %v952 = vpop.permute.xlu0 %951
      %953 = vrot.lane.b32.xlu0 %v514, 16
      %v954 = vpop.permute.xlu0 %953
      %955 = vrot.lane.b32.xlu0 %v516, 16
      %v956 = vpop.permute.xlu0 %955
      %957 = vrot.lane.b32.xlu0 %v519, 16
      %v958 = vpop.permute.xlu0 %957
      %959 = vrot.lane.b32.xlu0 %v521, 16
      %v960 = vpop.permute.xlu0 %959
      %961 = vrot.lane.b32.xlu0 %v524, 16
      %v962 = vpop.permute.xlu0 %961
      %963 = vrot.lane.b32.xlu0 %v526, 16
      %v964 = vpop.permute.xlu0 %963
      %965 = vrot.lane.b32.xlu0 %v529, 16
      %v966 = vpop.permute.xlu0 %965
      %967 = vrot.lane.b32.xlu0 %v531, 16
      %v968 = vpop.permute.xlu0 %967
      %969 = vrot.lane.b32.xlu0 %v534, 16
      %v970 = vpop.permute.xlu0 %969
      %971 = vrot.lane.b32.xlu0 %v536, 16
      %v972 = vpop.permute.xlu0 %971
      %973 = vrot.lane.b32.xlu0 %v910, 16
      %v974 = vpop.permute.xlu0 %973
      %975 = vrot.lane.b32.xlu0 %v912, 16
      %v976 = vpop.permute.xlu0 %975
      %v1009 = vrot.slane %v406, 2
      %v1010 = vrot.slane %v340, 2
      %v1011 = vsel %vm633, %v1009, %v1010
      %v1012 = vrot.slane %v423, 2
      %v1013 = vsel %vm633, %v1010, %v1012
      %1014 = vrot.lane.b32.xlu0 %v641, 20
      %v1015 = vpop.permute.xlu0 %1014
      %1016 = vrot.lane.b32.xlu0 %v643, 20
      %v1017 = vpop.permute.xlu0 %1016
      %1018 = vrot.lane.b32.xlu0 %v646, 20
      %v1019 = vpop.permute.xlu0 %1018
      %1020 = vrot.lane.b32.xlu0 %v648, 20
      %v1021 = vpop.permute.xlu0 %1020
      %1022 = vrot.lane.b32.xlu0 %v651, 20
      %v1023 = vpop.permute.xlu0 %1022
      %1024 = vrot.lane.b32.xlu0 %v653, 20
      %v1025 = vpop.permute.xlu0 %1024
      %1026 = vrot.lane.b32.xlu0 %v656, 20
      %v1027 = vpop.permute.xlu0 %1026
      %1028 = vrot.lane.b32.xlu0 %v658, 20
      %v1029 = vpop.permute.xlu0 %1028
      %1030 = vrot.lane.b32.xlu0 %v661, 20
      %v1031 = vpop.permute.xlu0 %1030
      %1032 = vrot.lane.b32.xlu0 %v663, 20
      %v1033 = vpop.permute.xlu0 %1032
      %1034 = vrot.lane.b32.xlu0 %v666, 20
      %v1035 = vpop.permute.xlu0 %1034
      %1036 = vrot.lane.b32.xlu0 %v668, 20
      %v1037 = vpop.permute.xlu0 %1036
      %1038 = vrot.lane.b32.xlu0 %v671, 20
      %v1039 = vpop.permute.xlu0 %1038
      %1040 = vrot.lane.b32.xlu0 %v673, 20
      %v1041 = vpop.permute.xlu0 %1040
      %1042 = vrot.lane.b32.xlu0 %v676, 20
      %v1043 = vpop.permute.xlu0 %1042
      %1044 = vrot.lane.b32.xlu0 %v678, 20
      %v1045 = vpop.permute.xlu0 %1044
      %1046 = vrot.lane.b32.xlu0 %v681, 20
      %v1047 = vpop.permute.xlu0 %1046
      %1048 = vrot.lane.b32.xlu0 %v683, 20
      %v1049 = vpop.permute.xlu0 %1048
      %1050 = vrot.lane.b32.xlu0 %v686, 20
      %v1051 = vpop.permute.xlu0 %1050
      %1052 = vrot.lane.b32.xlu0 %v688, 20
      %v1053 = vpop.permute.xlu0 %1052
      %1054 = vrot.lane.b32.xlu0 %v691, 20
      %v1055 = vpop.permute.xlu0 %1054
      %1056 = vrot.lane.b32.xlu0 %v693, 20
      %v1057 = vpop.permute.xlu0 %1056
      %1058 = vrot.lane.b32.xlu0 %v696, 20
      %v1059 = vpop.permute.xlu0 %1058
      %1060 = vrot.lane.b32.xlu0 %v698, 20
      %v1061 = vpop.permute.xlu0 %1060
      %1062 = vrot.lane.b32.xlu0 %v701, 20
      %v1063 = vpop.permute.xlu0 %1062
      %1064 = vrot.lane.b32.xlu0 %v703, 20
      %v1065 = vpop.permute.xlu0 %1064
      %1066 = vrot.lane.b32.xlu0 %v706, 20
      %v1067 = vpop.permute.xlu0 %1066
      %1068 = vrot.lane.b32.xlu0 %v708, 20
      %v1069 = vpop.permute.xlu0 %1068
      %1070 = vrot.lane.b32.xlu0 %v711, 20
      %v1071 = vpop.permute.xlu0 %1070
      %1072 = vrot.lane.b32.xlu0 %v713, 20
      %v1073 = vpop.permute.xlu0 %1072
      %1074 = vrot.lane.b32.xlu0 %v1011, 20
      %v1075 = vpop.permute.xlu0 %1074
      %1076 = vrot.lane.b32.xlu0 %v1013, 20
      %v1077 = vpop.permute.xlu0 %1076
      %1110 = vrot.lane.b32.xlu0 %v392, 24
      %v1111 = vpop.permute.xlu0 %1110
      %1112 = vrot.lane.b32.xlu0 %v298, 24
      %v1113 = vpop.permute.xlu0 %1112
      %1114 = vrot.lane.b32.xlu0 %v393, 24
      %v1115 = vpop.permute.xlu0 %1114
      %1116 = vrot.lane.b32.xlu0 %v301, 24
      %v1117 = vpop.permute.xlu0 %1116
      %1118 = vrot.lane.b32.xlu0 %v394, 24
      %v1119 = vpop.permute.xlu0 %1118
      %1120 = vrot.lane.b32.xlu0 %v304, 24
      %v1121 = vpop.permute.xlu0 %1120
      %1122 = vrot.lane.b32.xlu0 %v395, 24
      %v1123 = vpop.permute.xlu0 %1122
      %1124 = vrot.lane.b32.xlu0 %v307, 24
      %v1125 = vpop.permute.xlu0 %1124
      %1126 = vrot.lane.b32.xlu0 %v396, 24
      %v1127 = vpop.permute.xlu0 %1126
      %1128 = vrot.lane.b32.xlu0 %v310, 24
      %v1129 = vpop.permute.xlu0 %1128
      %1130 = vrot.lane.b32.xlu0 %v397, 24
      %v1131 = vpop.permute.xlu0 %1130
      %1132 = vrot.lane.b32.xlu0 %v313, 24
      %v1133 = vpop.permute.xlu0 %1132
      %1134 = vrot.lane.b32.xlu0 %v398, 24
      %v1135 = vpop.permute.xlu0 %1134
      %1136 = vrot.lane.b32.xlu0 %v316, 24
      %v1137 = vpop.permute.xlu0 %1136
      %1138 = vrot.lane.b32.xlu0 %v399, 24
      %v1139 = vpop.permute.xlu0 %1138
      %1140 = vrot.lane.b32.xlu0 %v319, 24
      %v1141 = vpop.permute.xlu0 %1140
      %1142 = vrot.lane.b32.xlu0 %v400, 24
      %v1143 = vpop.permute.xlu0 %1142
      %1144 = vrot.lane.b32.xlu0 %v322, 24
      %v1145 = vpop.permute.xlu0 %1144
      %1146 = vrot.lane.b32.xlu0 %v401, 24
      %v1147 = vpop.permute.xlu0 %1146
      %1148 = vrot.lane.b32.xlu0 %v325, 24
      %v1149 = vpop.permute.xlu0 %1148
      %1150 = vrot.lane.b32.xlu0 %v402, 24
      %v1151 = vpop.permute.xlu0 %1150
      %1152 = vrot.lane.b32.xlu0 %v328, 24
      %v1153 = vpop.permute.xlu0 %1152
      %1154 = vrot.lane.b32.xlu0 %v403, 24
      %v1155 = vpop.permute.xlu0 %1154
      %1156 = vrot.lane.b32.xlu0 %v331, 24
      %v1157 = vpop.permute.xlu0 %1156
      %1158 = vrot.lane.b32.xlu0 %v404, 24
      %v1159 = vpop.permute.xlu0 %1158
      %1160 = vrot.lane.b32.xlu0 %v334, 24
      %v1161 = vpop.permute.xlu0 %1160
      %1162 = vrot.lane.b32.xlu0 %v405, 24
      %v1163 = vpop.permute.xlu0 %1162
      %1164 = vrot.lane.b32.xlu0 %v337, 24
      %v1165 = vpop.permute.xlu0 %1164
      %1166 = vrot.lane.b32.xlu0 %v406, 24
      %v1167 = vpop.permute.xlu0 %1166
      %1168 = vrot.lane.b32.xlu0 %v340, 24
      %v1169 = vpop.permute.xlu0 %1168
      %1170 = vrot.lane.b32.xlu0 %v390, 24
      %v1171 = vpop.permute.xlu0 %1170
      %1172 = vrot.lane.b32.xlu0 %v292, 24
      %v1173 = vpop.permute.xlu0 %1172
      %1206 = vrot.lane.b32.xlu0 %v469, 28
      %v1207 = vpop.permute.xlu0 %1206
      %1208 = vrot.lane.b32.xlu0 %v471, 28
      %v1209 = vpop.permute.xlu0 %1208
      %1210 = vrot.lane.b32.xlu0 %v474, 28
      %v1211 = vpop.permute.xlu0 %1210
      %1212 = vrot.lane.b32.xlu0 %v476, 28
      %v1213 = vpop.permute.xlu0 %1212
      %1214 = vrot.lane.b32.xlu0 %v479, 28
      %v1215 = vpop.permute.xlu0 %1214
      %1216 = vrot.lane.b32.xlu0 %v481, 28
      %v1217 = vpop.permute.xlu0 %1216
      %1218 = vrot.lane.b32.xlu0 %v484, 28
      %v1219 = vpop.permute.xlu0 %1218
      %1220 = vrot.lane.b32.xlu0 %v486, 28
      %v1221 = vpop.permute.xlu0 %1220
      %1222 = vrot.lane.b32.xlu0 %v489, 28
      %v1223 = vpop.permute.xlu0 %1222
      %1224 = vrot.lane.b32.xlu0 %v491, 28
      %v1225 = vpop.permute.xlu0 %1224
      %1226 = vrot.lane.b32.xlu0 %v494, 28
      %v1227 = vpop.permute.xlu0 %1226
      %1228 = vrot.lane.b32.xlu0 %v496, 28
      %v1229 = vpop.permute.xlu0 %1228
      %1230 = vrot.lane.b32.xlu0 %v499, 28
      %v1231 = vpop.permute.xlu0 %1230
      %1232 = vrot.lane.b32.xlu0 %v501, 28
      %v1233 = vpop.permute.xlu0 %1232
      %1234 = vrot.lane.b32.xlu0 %v504, 28
      %v1235 = vpop.permute.xlu0 %1234
      %1236 = vrot.lane.b32.xlu0 %v506, 28
      %v1237 = vpop.permute.xlu0 %1236
      %1238 = vrot.lane.b32.xlu0 %v509, 28
      %v1239 = vpop.permute.xlu0 %1238
      %1240 = vrot.lane.b32.xlu0 %v511, 28
      %v1241 = vpop.permute.xlu0 %1240
      %1242 = vrot.lane.b32.xlu0 %v514, 28
      %v1243 = vpop.permute.xlu0 %1242
      %1244 = vrot.lane.b32.xlu0 %v516, 28
      %v1245 = vpop.permute.xlu0 %1244
      %1246 = vrot.lane.b32.xlu0 %v519, 28
      %v1247 = vpop.permute.xlu0 %1246
      %1248 = vrot.lane.b32.xlu0 %v521, 28
      %v1249 = vpop.permute.xlu0 %1248
      %1250 = vrot.lane.b32.xlu0 %v524, 28
      %v1251 = vpop.permute.xlu0 %1250
      %1252 = vrot.lane.b32.xlu0 %v526, 28
      %v1253 = vpop.permute.xlu0 %1252
      %1254 = vrot.lane.b32.xlu0 %v529, 28
      %v1255 = vpop.permute.xlu0 %1254
      %1256 = vrot.lane.b32.xlu0 %v531, 28
      %v1257 = vpop.permute.xlu0 %1256
      %1258 = vrot.lane.b32.xlu0 %v534, 28
      %v1259 = vpop.permute.xlu0 %1258
      %1260 = vrot.lane.b32.xlu0 %v536, 28
      %v1261 = vpop.permute.xlu0 %1260
      %1262 = vrot.lane.b32.xlu0 %v910, 28
      %v1263 = vpop.permute.xlu0 %1262
      %1264 = vrot.lane.b32.xlu0 %v912, 28
      %v1265 = vpop.permute.xlu0 %1264
      %1266 = vrot.lane.b32.xlu0 %v459, 28
      %v1267 = vpop.permute.xlu0 %1266
      %1268 = vrot.lane.b32.xlu0 %v461, 28
      %v1269 = vpop.permute.xlu0 %1268
      %1302 = vrot.lane.b32.xlu0 %v646, 32
      %v1303 = vpop.permute.xlu0 %1302
      %1304 = vrot.lane.b32.xlu0 %v648, 32
      %v1305 = vpop.permute.xlu0 %1304
      %1306 = vrot.lane.b32.xlu0 %v651, 32
      %v1307 = vpop.permute.xlu0 %1306
      %1308 = vrot.lane.b32.xlu0 %v653, 32
      %v1309 = vpop.permute.xlu0 %1308
      %1310 = vrot.lane.b32.xlu0 %v656, 32
      %v1311 = vpop.permute.xlu0 %1310
      %1312 = vrot.lane.b32.xlu0 %v658, 32
      %v1313 = vpop.permute.xlu0 %1312
      %1314 = vrot.lane.b32.xlu0 %v661, 32
      %v1315 = vpop.permute.xlu0 %1314
      %1316 = vrot.lane.b32.xlu0 %v663, 32
      %v1317 = vpop.permute.xlu0 %1316
      %1318 = vrot.lane.b32.xlu0 %v666, 32
      %v1319 = vpop.permute.xlu0 %1318
      %1320 = vrot.lane.b32.xlu0 %v668, 32
      %v1321 = vpop.permute.xlu0 %1320
      %1322 = vrot.lane.b32.xlu0 %v671, 32
      %v1323 = vpop.permute.xlu0 %1322
      %1324 = vrot.lane.b32.xlu0 %v673, 32
      %v1325 = vpop.permute.xlu0 %1324
      %1326 = vrot.lane.b32.xlu0 %v676, 32
      %v1327 = vpop.permute.xlu0 %1326
      %1328 = vrot.lane.b32.xlu0 %v678, 32
      %v1329 = vpop.permute.xlu0 %1328
      %1330 = vrot.lane.b32.xlu0 %v681, 32
      %v1331 = vpop.permute.xlu0 %1330
      %1332 = vrot.lane.b32.xlu0 %v683, 32
      %v1333 = vpop.permute.xlu0 %1332
      %1334 = vrot.lane.b32.xlu0 %v686, 32
      %v1335 = vpop.permute.xlu0 %1334
      %1336 = vrot.lane.b32.xlu0 %v688, 32
      %v1337 = vpop.permute.xlu0 %1336
      %1338 = vrot.lane.b32.xlu0 %v691, 32
      %v1339 = vpop.permute.xlu0 %1338
      %1340 = vrot.lane.b32.xlu0 %v693, 32
      %v1341 = vpop.permute.xlu0 %1340
      %1342 = vrot.lane.b32.xlu0 %v696, 32
      %v1343 = vpop.permute.xlu0 %1342
      %1344 = vrot.lane.b32.xlu0 %v698, 32
      %v1345 = vpop.permute.xlu0 %1344
      %1346 = vrot.lane.b32.xlu0 %v701, 32
      %v1347 = vpop.permute.xlu0 %1346
      %1348 = vrot.lane.b32.xlu0 %v703, 32
      %v1349 = vpop.permute.xlu0 %1348
      %1350 = vrot.lane.b32.xlu0 %v706, 32
      %v1351 = vpop.permute.xlu0 %1350
      %1352 = vrot.lane.b32.xlu0 %v708, 32
      %v1353 = vpop.permute.xlu0 %1352
      %1354 = vrot.lane.b32.xlu0 %v711, 32
      %v1355 = vpop.permute.xlu0 %1354
      %1356 = vrot.lane.b32.xlu0 %v713, 32
      %v1357 = vpop.permute.xlu0 %1356
      %1358 = vrot.lane.b32.xlu0 %v1011, 32
      %v1359 = vpop.permute.xlu0 %1358
      %1360 = vrot.lane.b32.xlu0 %v1013, 32
      %v1361 = vpop.permute.xlu0 %1360
      %1362 = vrot.lane.b32.xlu0 %v636, 32
      %v1363 = vpop.permute.xlu0 %1362
      %1364 = vrot.lane.b32.xlu0 %v638, 32
      %v1365 = vpop.permute.xlu0 %1364
      %vm1398 = vcmask 31744
      %v1399 = vsel %vm1398, %v390, %v538
      %v1400 = vsel %vm1398, %v292, %v540
      %v1401 = vsel %vm1398, %v391, %v542
      %v1402 = vsel %vm1398, %v295, %v544
      %v1403 = vsel %vm1398, %v392, %v546
      %v1404 = vsel %vm1398, %v298, %v548
      %v1405 = vsel %vm1398, %v393, %v550
      %v1406 = vsel %vm1398, %v301, %v552
      %v1407 = vsel %vm1398, %v394, %v554
      %v1408 = vsel %vm1398, %v304, %v556
      %v1409 = vsel %vm1398, %v395, %v558
      %v1410 = vsel %vm1398, %v307, %v560
      %v1411 = vsel %vm1398, %v396, %v562
      %v1412 = vsel %vm1398, %v310, %v564
      %v1413 = vsel %vm1398, %v397, %v566
      %v1414 = vsel %vm1398, %v313, %v568
      %v1415 = vsel %vm1398, %v398, %v570
      %v1416 = vsel %vm1398, %v316, %v572
      %v1417 = vsel %vm1398, %v399, %v574
      %v1418 = vsel %vm1398, %v319, %v576
      %v1419 = vsel %vm1398, %v400, %v578
      %v1420 = vsel %vm1398, %v322, %v580
      %v1421 = vsel %vm1398, %v401, %v582
      %v1422 = vsel %vm1398, %v325, %v584
      %v1423 = vsel %vm1398, %v402, %v586
      %v1424 = vsel %vm1398, %v328, %v588
      %v1425 = vsel %vm1398, %v403, %v590
      %v1426 = vsel %vm1398, %v331, %v592
      %v1427 = vsel %vm1398, %v404, %v594
      %v1428 = vsel %vm1398, %v334, %v596
      %v1429 = vsel %vm1398, %v405, %v598
      %v1430 = vsel %vm1398, %v337, %v600
      %vm1431 = vcmask 64512
      %v1432 = vsel %vm1431, %v1399, %v715
      %v1433 = vsel %vm1431, %v1400, %v717
      %v1434 = vsel %vm1431, %v1401, %v719
      %v1435 = vsel %vm1431, %v1402, %v721
      %v1436 = vsel %vm1431, %v1403, %v723
      %v1437 = vsel %vm1431, %v1404, %v725
      %v1438 = vsel %vm1431, %v1405, %v727
      %v1439 = vsel %vm1431, %v1406, %v729
      %v1440 = vsel %vm1431, %v1407, %v731
      %v1441 = vsel %vm1431, %v1408, %v733
      %v1442 = vsel %vm1431, %v1409, %v735
      %v1443 = vsel %vm1431, %v1410, %v737
      %v1444 = vsel %vm1431, %v1411, %v739
      %v1445 = vsel %vm1431, %v1412, %v741
      %v1446 = vsel %vm1431, %v1413, %v743
      %v1447 = vsel %vm1431, %v1414, %v745
      %v1448 = vsel %vm1431, %v1415, %v747
      %v1449 = vsel %vm1431, %v1416, %v749
      %v1450 = vsel %vm1431, %v1417, %v751
      %v1451 = vsel %vm1431, %v1418, %v753
      %v1452 = vsel %vm1431, %v1419, %v755
      %v1453 = vsel %vm1431, %v1420, %v757
      %v1454 = vsel %vm1431, %v1421, %v759
      %v1455 = vsel %vm1431, %v1422, %v761
      %v1456 = vsel %vm1431, %v1423, %v763
      %v1457 = vsel %vm1431, %v1424, %v765
      %v1458 = vsel %vm1431, %v1425, %v767
      %v1459 = vsel %vm1431, %v1426, %v769
      %v1460 = vsel %vm1431, %v1427, %v771
      %v1461 = vsel %vm1431, %v1428, %v773
      %v1462 = vsel %vm1431, %v1429, %v775
      %v1463 = vsel %vm1431, %v1430, %v777
      %vm1464 = vcmask 97280
      %v1465 = vsel %vm1464, %v1432, %v812
      %v1466 = vsel %vm1464, %v1433, %v814
      %v1467 = vsel %vm1464, %v1434, %v816
      %v1468 = vsel %vm1464, %v1435, %v818
      %v1469 = vsel %vm1464, %v1436, %v820
      %v1470 = vsel %vm1464, %v1437, %v822
      %v1471 = vsel %vm1464, %v1438, %v824
      %v1472 = vsel %vm1464, %v1439, %v826
      %v1473 = vsel %vm1464, %v1440, %v828
      %v1474 = vsel %vm1464, %v1441, %v830
      %v1475 = vsel %vm1464, %v1442, %v832
      %v1476 = vsel %vm1464, %v1443, %v834
      %v1477 = vsel %vm1464, %v1444, %v836
      %v1478 = vsel %vm1464, %v1445, %v838
      %v1479 = vsel %vm1464, %v1446, %v840
      %v1480 = vsel %vm1464, %v1447, %v842
      %v1481 = vsel %vm1464, %v1448, %v844
      %v1482 = vsel %vm1464, %v1449, %v846
      %v1483 = vsel %vm1464, %v1450, %v848
      %v1484 = vsel %vm1464, %v1451, %v850
      %v1485 = vsel %vm1464, %v1452, %v852
      %v1486 = vsel %vm1464, %v1453, %v854
      %v1487 = vsel %vm1464, %v1454, %v856
      %v1488 = vsel %vm1464, %v1455, %v858
      %v1489 = vsel %vm1464, %v1456, %v860
      %v1490 = vsel %vm1464, %v1457, %v862
      %v1491 = vsel %vm1464, %v1458, %v864
      %v1492 = vsel %vm1464, %v1459, %v866
      %v1493 = vsel %vm1464, %v1460, %v868
      %v1494 = vsel %vm1464, %v1461, %v870
      %v1495 = vsel %vm1464, %v1462, %v872
      %v1496 = vsel %vm1464, %v1463, %v874
      %vm1497 = vcmask 130048
      %v1498 = vsel %vm1497, %v1465, %v914
      %v1499 = vsel %vm1497, %v1466, %v916
      %v1500 = vsel %vm1497, %v1467, %v918
      %v1501 = vsel %vm1497, %v1468, %v920
      %v1502 = vsel %vm1497, %v1469, %v922
      %v1503 = vsel %vm1497, %v1470, %v924
      %v1504 = vsel %vm1497, %v1471, %v926
      %v1505 = vsel %vm1497, %v1472, %v928
      %v1506 = vsel %vm1497, %v1473, %v930
      %v1507 = vsel %vm1497, %v1474, %v932
      %v1508 = vsel %vm1497, %v1475, %v934
      %v1509 = vsel %vm1497, %v1476, %v936
      %v1510 = vsel %vm1497, %v1477, %v938
      %v1511 = vsel %vm1497, %v1478, %v940
      %v1512 = vsel %vm1497, %v1479, %v942
      %v1513 = vsel %vm1497, %v1480, %v944
      %v1514 = vsel %vm1497, %v1481, %v946
      %v1515 = vsel %vm1497, %v1482, %v948
      %v1516 = vsel %vm1497, %v1483, %v950
      %v1517 = vsel %vm1497, %v1484, %v952
      %v1518 = vsel %vm1497, %v1485, %v954
      %v1519 = vsel %vm1497, %v1486, %v956
      %v1520 = vsel %vm1497, %v1487, %v958
      %v1521 = vsel %vm1497, %v1488, %v960
      %v1522 = vsel %vm1497, %v1489, %v962
      %v1523 = vsel %vm1497, %v1490, %v964
      %v1524 = vsel %vm1497, %v1491, %v966
      %v1525 = vsel %vm1497, %v1492, %v968
      %v1526 = vsel %vm1497, %v1493, %v970
      %v1527 = vsel %vm1497, %v1494, %v972
      %v1528 = vsel %vm1497, %v1495, %v974
      %v1529 = vsel %vm1497, %v1496, %v976
      %vm1530 = vcmask 162816
      %v1531 = vsel %vm1530, %v1498, %v1015
      %v1532 = vsel %vm1530, %v1499, %v1017
      %v1533 = vsel %vm1530, %v1500, %v1019
      %v1534 = vsel %vm1530, %v1501, %v1021
      %v1535 = vsel %vm1530, %v1502, %v1023
      %v1536 = vsel %vm1530, %v1503, %v1025
      %v1537 = vsel %vm1530, %v1504, %v1027
      %v1538 = vsel %vm1530, %v1505, %v1029
      %v1539 = vsel %vm1530, %v1506, %v1031
      %v1540 = vsel %vm1530, %v1507, %v1033
      %v1541 = vsel %vm1530, %v1508, %v1035
      %v1542 = vsel %vm1530, %v1509, %v1037
      %v1543 = vsel %vm1530, %v1510, %v1039
      %v1544 = vsel %vm1530, %v1511, %v1041
      %v1545 = vsel %vm1530, %v1512, %v1043
      %v1546 = vsel %vm1530, %v1513, %v1045
      %v1547 = vsel %vm1530, %v1514, %v1047
      %v1548 = vsel %vm1530, %v1515, %v1049
      %v1549 = vsel %vm1530, %v1516, %v1051
      %v1550 = vsel %vm1530, %v1517, %v1053
      %v1551 = vsel %vm1530, %v1518, %v1055
      %v1552 = vsel %vm1530, %v1519, %v1057
      %v1553 = vsel %vm1530, %v1520, %v1059
      %v1554 = vsel %vm1530, %v1521, %v1061
      %v1555 = vsel %vm1530, %v1522, %v1063
      %v1556 = vsel %vm1530, %v1523, %v1065
      %v1557 = vsel %vm1530, %v1524, %v1067
      %v1558 = vsel %vm1530, %v1525, %v1069
      %v1559 = vsel %vm1530, %v1526, %v1071
      %v1560 = vsel %vm1530, %v1527, %v1073
      %v1561 = vsel %vm1530, %v1528, %v1075
      %v1562 = vsel %vm1530, %v1529, %v1077
      %vm1563 = vcmask 195584
      %v1564 = vsel %vm1563, %v1531, %v1111
      %v1565 = vsel %vm1563, %v1532, %v1113
      %v1566 = vsel %vm1563, %v1533, %v1115
      %v1567 = vsel %vm1563, %v1534, %v1117
      %v1568 = vsel %vm1563, %v1535, %v1119
      %v1569 = vsel %vm1563, %v1536, %v1121
      %v1570 = vsel %vm1563, %v1537, %v1123
      %v1571 = vsel %vm1563, %v1538, %v1125
      %v1572 = vsel %vm1563, %v1539, %v1127
      %v1573 = vsel %vm1563, %v1540, %v1129
      %v1574 = vsel %vm1563, %v1541, %v1131
      %v1575 = vsel %vm1563, %v1542, %v1133
      %v1576 = vsel %vm1563, %v1543, %v1135
      %v1577 = vsel %vm1563, %v1544, %v1137
      %v1578 = vsel %vm1563, %v1545, %v1139
      %v1579 = vsel %vm1563, %v1546, %v1141
      %v1580 = vsel %vm1563, %v1547, %v1143
      %v1581 = vsel %vm1563, %v1548, %v1145
      %v1582 = vsel %vm1563, %v1549, %v1147
      %v1583 = vsel %vm1563, %v1550, %v1149
      %v1584 = vsel %vm1563, %v1551, %v1151
      %v1585 = vsel %vm1563, %v1552, %v1153
      %v1586 = vsel %vm1563, %v1553, %v1155
      %v1587 = vsel %vm1563, %v1554, %v1157
      %v1588 = vsel %vm1563, %v1555, %v1159
      %v1589 = vsel %vm1563, %v1556, %v1161
      %v1590 = vsel %vm1563, %v1557, %v1163
      %v1591 = vsel %vm1563, %v1558, %v1165
      %v1592 = vsel %vm1563, %v1559, %v1167
      %v1593 = vsel %vm1563, %v1560, %v1169
      %v1594 = vsel %vm1563, %v1561, %v1171
      %v1595 = vsel %vm1563, %v1562, %v1173
      %vm1596 = vcmask 228352
      %v1597 = vsel %vm1596, %v1564, %v1207
      %v1598 = vsel %vm1596, %v1565, %v1209
      %v1599 = vsel %vm1596, %v1566, %v1211
      %v1600 = vsel %vm1596, %v1567, %v1213
      %v1601 = vsel %vm1596, %v1568, %v1215
      %v1602 = vsel %vm1596, %v1569, %v1217
      %v1603 = vsel %vm1596, %v1570, %v1219
      %v1604 = vsel %vm1596, %v1571, %v1221
      %v1605 = vsel %vm1596, %v1572, %v1223
      %v1606 = vsel %vm1596, %v1573, %v1225
      %v1607 = vsel %vm1596, %v1574, %v1227
      %v1608 = vsel %vm1596, %v1575, %v1229
      %v1609 = vsel %vm1596, %v1576, %v1231
      %v1610 = vsel %vm1596, %v1577, %v1233
      %v1611 = vsel %vm1596, %v1578, %v1235
      %v1612 = vsel %vm1596, %v1579, %v1237
      %v1613 = vsel %vm1596, %v1580, %v1239
      %v1614 = vsel %vm1596, %v1581, %v1241
      %v1615 = vsel %vm1596, %v1582, %v1243
      %v1616 = vsel %vm1596, %v1583, %v1245
      %v1617 = vsel %vm1596, %v1584, %v1247
      %v1618 = vsel %vm1596, %v1585, %v1249
      %v1619 = vsel %vm1596, %v1586, %v1251
      %v1620 = vsel %vm1596, %v1587, %v1253
      %v1621 = vsel %vm1596, %v1588, %v1255
      %v1622 = vsel %vm1596, %v1589, %v1257
      %v1623 = vsel %vm1596, %v1590, %v1259
      %v1624 = vsel %vm1596, %v1591, %v1261
      %v1625 = vsel %vm1596, %v1592, %v1263
      %v1626 = vsel %vm1596, %v1593, %v1265
      %v1627 = vsel %vm1596, %v1594, %v1267
      %v1628 = vsel %vm1596, %v1595, %v1269
      %vm1629 = vcmask 261120
      %v1630 = vsel %vm1629, %v1597, %v1303
      %v1631 = vsel %vm1629, %v1598, %v1305
      %v1632 = vsel %vm1629, %v1599, %v1307
      %v1633 = vsel %vm1629, %v1600, %v1309
      %v1634 = vsel %vm1629, %v1601, %v1311
      %v1635 = vsel %vm1629, %v1602, %v1313
      %v1636 = vsel %vm1629, %v1603, %v1315
      %v1637 = vsel %vm1629, %v1604, %v1317
      %v1638 = vsel %vm1629, %v1605, %v1319
      %v1639 = vsel %vm1629, %v1606, %v1321
      %v1640 = vsel %vm1629, %v1607, %v1323
      %v1641 = vsel %vm1629, %v1608, %v1325
      %v1642 = vsel %vm1629, %v1609, %v1327
      %v1643 = vsel %vm1629, %v1610, %v1329
      %v1644 = vsel %vm1629, %v1611, %v1331
      %v1645 = vsel %vm1629, %v1612, %v1333
      %v1646 = vsel %vm1629, %v1613, %v1335
      %v1647 = vsel %vm1629, %v1614, %v1337
      %v1648 = vsel %vm1629, %v1615, %v1339
      %v1649 = vsel %vm1629, %v1616, %v1341
      %v1650 = vsel %vm1629, %v1617, %v1343
      %v1651 = vsel %vm1629, %v1618, %v1345
      %v1652 = vsel %vm1629, %v1619, %v1347
      %v1653 = vsel %vm1629, %v1620, %v1349
      %v1654 = vsel %vm1629, %v1621, %v1351
      %v1655 = vsel %vm1629, %v1622, %v1353
      %v1656 = vsel %vm1629, %v1623, %v1355
      %v1657 = vsel %vm1629, %v1624, %v1357
      %v1658 = vsel %vm1629, %v1625, %v1359
      %v1659 = vsel %vm1629, %v1626, %v1361
      %v1660 = vsel %vm1629, %v1627, %v1363
      %v1661 = vsel %vm1629, %v1628, %v1365
      %v1662 = vld [vmem:[%s1] sm:$0xff]
      %v1663 = vld [vmem:[%s1 + $0x8] sm:$0xff]
      %v1664 = vld [vmem:[%s1 + $0x10] sm:$0xff]
      %v1665 = vld [vmem:[%s1 + $0x18] sm:$0xff]
      %v1666 = vld [vmem:[%s1 + $0x20] sm:$0xf]
      %v1667 = vld [vmem:[%s2] sm:$0x1]
      %v1669 = vlaneseq
      %v1670 = vshrl.u32 %v1669, 7
      %v1671 = vsub.s32 0, %v1670
      %v1672 = vrot.slane %v1667, %v1671
      %vm1674 = vcmask 293888
      %v1676 = vsel %vm1674, %v1630, 0
      %v1679 = vsel %vm1674, %v1631, 0
      %v1682 = vsel %vm1674, %v1632, 0
      %v1685 = vsel %vm1674, %v1633, 0
      %v1688 = vsel %vm1674, %v1634, 0
      %v1691 = vsel %vm1674, %v1635, 0
      %v1694 = vsel %vm1674, %v1636, 0
      %v1697 = vsel %vm1674, %v1637, 0
      %v1700 = vsel %vm1674, %v1638, 0
      %v1703 = vsel %vm1674, %v1639, 0
      %v1706 = vsel %vm1674, %v1640, 0
      %v1709 = vsel %vm1674, %v1641, 0
      %v1712 = vsel %vm1674, %v1642, 0
      %v1715 = vsel %vm1674, %v1643, 0
      %v1718 = vsel %vm1674, %v1644, 0
      %v1721 = vsel %vm1674, %v1645, 0
      %v1724 = vsel %vm1674, %v1646, 0
      %v1727 = vsel %vm1674, %v1647, 0
      %v1730 = vsel %vm1674, %v1648, 0
      %v1733 = vsel %vm1674, %v1649, 0
      %v1736 = vsel %vm1674, %v1650, 0
      %v1739 = vsel %vm1674, %v1651, 0
      %v1742 = vsel %vm1674, %v1652, 0
      %v1745 = vsel %vm1674, %v1653, 0
      %v1748 = vsel %vm1674, %v1654, 0
      %v1751 = vsel %vm1674, %v1655, 0
      %v1754 = vsel %vm1674, %v1656, 0
      %v1757 = vsel %vm1674, %v1657, 0
      %v1760 = vsel %vm1674, %v1658, 0
      %v1763 = vsel %vm1674, %v1659, 0
      %v1766 = vsel %vm1674, %v1660, 0
      %v1769 = vsel %vm1674, %v1661, 0
      %vm1771 = vcmask 1043456
      %v1773 = vsel %vm1771, %v1666, 0
      %1775 = vmatprep.subr.mxu0 0.0
      %1776 = vmatpush1.msra.mxu0 0.0
      %1777 = vmatprep.subr.mxu0 0.0
      %1778 = vmatpush1.msra.mxu0 0.0
      %1779 = vmatprep.subr.mxu0 0.0
      %1780 = vmatpush1.msra.mxu0 0.0
      %1781 = vmatprep.subr.mxu0 0.0
      %1782 = vmatpush1.msra.mxu0 0.0
      %1783 = vmatprep.subr.mxu0 0.0
      %1784 = vmatpush1.msra.mxu0 0.0
      %1785 = vmatprep.subr.mxu0 0.0
      %1786 = vmatpush1.msra.mxu0 0.0
      %1787 = vmatprep.subr.mxu0 0.0
      %1788 = vmatpush1.msra.mxu0 0.0
      %1789 = vmatprep.subr.mxu0 0.0
      %1790 = vmatpush1.msra.mxu0 0.0
      %1791 = vmatprep.subr.mxu0 0.0
      %1792 = vmatpush1.msra.mxu0 0.0
      %1793 = vmatprep.subr.mxu0 0.0
      %1794 = vmatpush1.msra.mxu0 0.0
      %1795 = vmatprep.subr.mxu0 0.0
      %1796 = vmatpush1.msra.mxu0 0.0
      %1797 = vmatprep.subr.mxu0 0.0
      %1798 = vmatpush1.msra.mxu0 %v1773
      %1799 = vmatprep.subr.mxu0 0.0
      %1800 = vmatpush1.msra.mxu0 %v1665
      %1801 = vmatprep.subr.mxu0 0.0
      %1802 = vmatpush1.msra.mxu0 %v1664
      %1803 = vmatprep.subr.mxu0 0.0
      %1804 = vmatpush1.msra.mxu0 %v1663
      %1805 = vmatprep.subr.mxu0 0.0
      %1806 = vmatpush1.msra.mxu0 %v1662
      %1807 = vmatprep.subr.mxu0 0.0
      %1808 = vmatpush2.msra.mxu0 0.0
      %1809 = vmatprep.subr.mxu0 0.0
      %1810 = vmatpush2.msra.mxu0 0.0
      %1811 = vmatprep.subr.mxu0 0.0
      %1812 = vmatpush2.msra.mxu0 0.0
      %1813 = vmatprep.subr.mxu0 0.0
      %1814 = vmatpush2.msra.mxu0 0.0
      %1815 = vmatprep.subr.mxu0 0.0
      %1816 = vmatpush2.msra.mxu0 0.0
      %1817 = vmatprep.subr.mxu0 0.0
      %1818 = vmatpush2.msra.mxu0 0.0
      %1819 = vmatprep.subr.mxu0 0.0
      %1820 = vmatpush2.msra.mxu0 0.0
      %1821 = vmatprep.subr.mxu0 0.0
      %1822 = vmatpush2.msra.mxu0 0.0
      %1823 = vmatprep.subr.mxu0 0.0
      %1824 = vmatpush2.msra.mxu0 0.0
      %1825 = vmatprep.subr.mxu0 0.0
      %1826 = vmatpush2.msra.mxu0 0.0
      %1827 = vmatprep.subr.mxu0 0.0
      %1828 = vmatpush2.msra.mxu0 0.0
      %1829 = vmatprep.subr.mxu0 0.0
      %1830 = vmatpush2.msra.mxu0 0.0
      %1831 = vmatprep.subr.mxu0 0.0
      %1832 = vmatpush2.msra.mxu0 0.0
      %1833 = vmatprep.subr.mxu0 0.0
      %1834 = vmatpush2.msra.mxu0 0.0
      %1835 = vmatprep.subr.mxu0 0.0
      %1836 = vmatpush2.msra.mxu0 0.0
      %1837 = vmatprep.subr.mxu0 0.0
      %1838 = vmatpush2.msra.mxu0 0.0
      %1839 = vmatprep.mubr.f32.mxu0 0.0
      %1840 = vmatmul.mubr.f32.gmra.mxu0 %v1676
      %v1841 = vpop.f32.mrf.mxu0
      %v1842 = vadd.f32 %v1672, %v1841
      %v1843 = vpop.f32.mrf.mxu0
      %1844 = vmatprep.mubr.f32.mxu0 0.0
      %1845 = vmatmul.mubr.f32.gmra.mxu0 %v1679
      %v1846 = vpop.f32.mrf.mxu0
      %v1847 = vadd.f32 %v1672, %v1846
      %v1848 = vpop.f32.mrf.mxu0
      %1849 = vmatprep.mubr.f32.mxu0 0.0
      %1850 = vmatmul.mubr.f32.gmra.mxu0 %v1682
      %v1851 = vpop.f32.mrf.mxu0
      %v1852 = vadd.f32 %v1672, %v1851
      %v1853 = vpop.f32.mrf.mxu0
      %1854 = vmatprep.mubr.f32.mxu0 0.0
      %1855 = vmatmul.mubr.f32.gmra.mxu0 %v1685
      %v1856 = vpop.f32.mrf.mxu0
      %v1857 = vadd.f32 %v1672, %v1856
      %v1858 = vpop.f32.mrf.mxu0
      %1859 = vmatprep.mubr.f32.mxu0 0.0
      %1860 = vmatmul.mubr.f32.gmra.mxu0 %v1688
      %v1861 = vpop.f32.mrf.mxu0
      %v1862 = vadd.f32 %v1672, %v1861
      %v1863 = vpop.f32.mrf.mxu0
      %1864 = vmatprep.mubr.f32.mxu0 0.0
      %1865 = vmatmul.mubr.f32.gmra.mxu0 %v1691
      %v1866 = vpop.f32.mrf.mxu0
      %v1867 = vadd.f32 %v1672, %v1866
      %v1868 = vpop.f32.mrf.mxu0
      %1869 = vmatprep.mubr.f32.mxu0 0.0
      %1870 = vmatmul.mubr.f32.gmra.mxu0 %v1694
      %v1871 = vpop.f32.mrf.mxu0
      %v1872 = vadd.f32 %v1672, %v1871
      %v1873 = vpop.f32.mrf.mxu0
      %1874 = vmatprep.mubr.f32.mxu0 0.0
      %1875 = vmatmul.mubr.f32.gmra.mxu0 %v1697
      %v1876 = vpop.f32.mrf.mxu0
      %v1877 = vadd.f32 %v1672, %v1876
      %v1878 = vpop.f32.mrf.mxu0
      %1879 = vmatprep.mubr.f32.mxu0 0.0
      %1880 = vmatmul.mubr.f32.gmra.mxu0 %v1700
      %v1881 = vpop.f32.mrf.mxu0
      %v1882 = vadd.f32 %v1672, %v1881
      %v1883 = vpop.f32.mrf.mxu0
      %1884 = vmatprep.mubr.f32.mxu0 0.0
      %1885 = vmatmul.mubr.f32.gmra.mxu0 %v1703
      %v1886 = vpop.f32.mrf.mxu0
      %v1887 = vadd.f32 %v1672, %v1886
      %v1888 = vpop.f32.mrf.mxu0
      %1889 = vmatprep.mubr.f32.mxu0 0.0
      %1890 = vmatmul.mubr.f32.gmra.mxu0 %v1706
      %v1891 = vpop.f32.mrf.mxu0
      %v1892 = vadd.f32 %v1672, %v1891
      %v1893 = vpop.f32.mrf.mxu0
      %1894 = vmatprep.mubr.f32.mxu0 0.0
      %1895 = vmatmul.mubr.f32.gmra.mxu0 %v1709
      %v1896 = vpop.f32.mrf.mxu0
      %v1897 = vadd.f32 %v1672, %v1896
      %v1898 = vpop.f32.mrf.mxu0
      %1899 = vmatprep.mubr.f32.mxu0 0.0
      %1900 = vmatmul.mubr.f32.gmra.mxu0 %v1712
      %v1901 = vpop.f32.mrf.mxu0
      %v1902 = vadd.f32 %v1672, %v1901
      %v1903 = vpop.f32.mrf.mxu0
      %1904 = vmatprep.mubr.f32.mxu0 0.0
      %1905 = vmatmul.mubr.f32.gmra.mxu0 %v1715
      %v1906 = vpop.f32.mrf.mxu0
      %v1907 = vadd.f32 %v1672, %v1906
      %v1908 = vpop.f32.mrf.mxu0
      %1909 = vmatprep.mubr.f32.mxu0 0.0
      %1910 = vmatmul.mubr.f32.gmra.mxu0 %v1718
      %v1911 = vpop.f32.mrf.mxu0
      %v1912 = vadd.f32 %v1672, %v1911
      %v1913 = vpop.f32.mrf.mxu0
      %1914 = vmatprep.mubr.f32.mxu0 0.0
      %1915 = vmatmul.mubr.f32.gmra.mxu0 %v1721
      %v1916 = vpop.f32.mrf.mxu0
      %v1917 = vadd.f32 %v1672, %v1916
      %v1918 = vpop.f32.mrf.mxu0
      %1919 = vmatprep.mubr.f32.mxu0 0.0
      %1920 = vmatmul.mubr.f32.gmra.mxu0 %v1724
      %v1921 = vpop.f32.mrf.mxu0
      %v1922 = vadd.f32 %v1672, %v1921
      %v1923 = vpop.f32.mrf.mxu0
      %1924 = vmatprep.mubr.f32.mxu0 0.0
      %1925 = vmatmul.mubr.f32.gmra.mxu0 %v1727
      %v1926 = vpop.f32.mrf.mxu0
      %v1927 = vadd.f32 %v1672, %v1926
      %v1928 = vpop.f32.mrf.mxu0
      %1929 = vmatprep.mubr.f32.mxu0 0.0
      %1930 = vmatmul.mubr.f32.gmra.mxu0 %v1730
      %v1931 = vpop.f32.mrf.mxu0
      %v1932 = vadd.f32 %v1672, %v1931
      %v1933 = vpop.f32.mrf.mxu0
      %1934 = vmatprep.mubr.f32.mxu0 0.0
      %1935 = vmatmul.mubr.f32.gmra.mxu0 %v1733
      %v1936 = vpop.f32.mrf.mxu0
      %v1937 = vadd.f32 %v1672, %v1936
      %v1938 = vpop.f32.mrf.mxu0
      %1939 = vmatprep.mubr.f32.mxu0 0.0
      %1940 = vmatmul.mubr.f32.gmra.mxu0 %v1736
      %v1941 = vpop.f32.mrf.mxu0
      %v1942 = vadd.f32 %v1672, %v1941
      %v1943 = vpop.f32.mrf.mxu0
      %1944 = vmatprep.mubr.f32.mxu0 0.0
      %1945 = vmatmul.mubr.f32.gmra.mxu0 %v1739
      %v1946 = vpop.f32.mrf.mxu0
      %v1947 = vadd.f32 %v1672, %v1946
      %v1948 = vpop.f32.mrf.mxu0
      %1949 = vmatprep.mubr.f32.mxu0 0.0
      %1950 = vmatmul.mubr.f32.gmra.mxu0 %v1742
      %v1951 = vpop.f32.mrf.mxu0
      %v1952 = vadd.f32 %v1672, %v1951
      %v1953 = vpop.f32.mrf.mxu0
      %1954 = vmatprep.mubr.f32.mxu0 0.0
      %1955 = vmatmul.mubr.f32.gmra.mxu0 %v1745
      %v1956 = vpop.f32.mrf.mxu0
      %v1957 = vadd.f32 %v1672, %v1956
      %v1958 = vpop.f32.mrf.mxu0
      %1959 = vmatprep.mubr.f32.mxu0 0.0
      %1960 = vmatmul.mubr.f32.gmra.mxu0 %v1748
      %v1961 = vpop.f32.mrf.mxu0
      %v1962 = vadd.f32 %v1672, %v1961
      %v1963 = vpop.f32.mrf.mxu0
      %1964 = vmatprep.mubr.f32.mxu0 0.0
      %1965 = vmatmul.mubr.f32.gmra.mxu0 %v1751
      %v1966 = vpop.f32.mrf.mxu0
      %v1967 = vadd.f32 %v1672, %v1966
      %v1968 = vpop.f32.mrf.mxu0
      %1969 = vmatprep.mubr.f32.mxu0 0.0
      %1970 = vmatmul.mubr.f32.gmra.mxu0 %v1754
      %v1971 = vpop.f32.mrf.mxu0
      %v1972 = vadd.f32 %v1672, %v1971
      %v1973 = vpop.f32.mrf.mxu0
      %1974 = vmatprep.mubr.f32.mxu0 0.0
      %1975 = vmatmul.mubr.f32.gmra.mxu0 %v1757
      %v1976 = vpop.f32.mrf.mxu0
      %v1977 = vadd.f32 %v1672, %v1976
      %v1978 = vpop.f32.mrf.mxu0
      %1979 = vmatprep.mubr.f32.mxu0 0.0
      %1980 = vmatmul.mubr.f32.gmra.mxu0 %v1760
      %v1981 = vpop.f32.mrf.mxu0
      %v1982 = vadd.f32 %v1672, %v1981
      %v1983 = vpop.f32.mrf.mxu0
      %1984 = vmatprep.mubr.f32.mxu0 0.0
      %1985 = vmatmul.mubr.f32.gmra.mxu0 %v1763
      %v1986 = vpop.f32.mrf.mxu0
      %v1987 = vadd.f32 %v1672, %v1986
      %v1988 = vpop.f32.mrf.mxu0
      %1989 = vmatprep.mubr.f32.mxu0 0.0
      %1990 = vmatmul.mubr.f32.gmra.mxu0 %v1766
      %v1991 = vpop.f32.mrf.mxu0
      %v1992 = vadd.f32 %v1672, %v1991
      %v1993 = vpop.f32.mrf.mxu0
      %1994 = vmatprep.mubr.f32.mxu0 0.0
      %1995 = vmatmul.mubr.f32.gmra.mxu0 %v1769
      %v1996 = vpop.f32.mrf.mxu0
      %v1997 = vadd.f32 %v1672, %v1996
      %v1998 = vpop.f32.mrf.mxu0
      %1999 = vdwg.mxu0
      %v2000 = vmax.f32 %v1842, 0.0
      %v2001 = vmax.f32 %v1847, 0.0
      %v2002 = vmax.f32 %v1852, 0.0
      %v2003 = vmax.f32 %v1857, 0.0
      %v2004 = vmax.f32 %v1862, 0.0
      %v2005 = vmax.f32 %v1867, 0.0
      %v2006 = vmax.f32 %v1872, 0.0
      %v2007 = vmax.f32 %v1877, 0.0
      %v2008 = vmax.f32 %v1882, 0.0
      %v2009 = vmax.f32 %v1887, 0.0
      %v2010 = vmax.f32 %v1892, 0.0
      %v2011 = vmax.f32 %v1897, 0.0
      %v2012 = vmax.f32 %v1902, 0.0
      %v2013 = vmax.f32 %v1907, 0.0
      %v2014 = vmax.f32 %v1912, 0.0
      %v2015 = vmax.f32 %v1917, 0.0
      %v2016 = vmax.f32 %v1922, 0.0
      %v2017 = vmax.f32 %v1927, 0.0
      %v2018 = vmax.f32 %v1932, 0.0
      %v2019 = vmax.f32 %v1937, 0.0
      %v2020 = vmax.f32 %v1942, 0.0
      %v2021 = vmax.f32 %v1947, 0.0
      %v2022 = vmax.f32 %v1952, 0.0
      %v2023 = vmax.f32 %v1957, 0.0
      %v2024 = vmax.f32 %v1962, 0.0
      %v2025 = vmax.f32 %v1967, 0.0
      %v2026 = vmax.f32 %v1972, 0.0
      %v2027 = vmax.f32 %v1977, 0.0
      %v2028 = vmax.f32 %v1982, 0.0
      %v2029 = vmax.f32 %v1987, 0.0
      %v2030 = vmax.f32 %v1992, 0.0
      %v2031 = vmax.f32 %v1997, 0.0
      %v2064 = vrot.slane %v2000, 7
      %v2065 = vrot.slane %v2001, 7
      %v2066 = vsel %vm290, %v2064, %v2065
      %v2067 = vrot.slane %v2002, 7
      %v2068 = vrot.slane %v2003, 7
      %v2069 = vsel %vm290, %v2067, %v2068
      %v2070 = vrot.slane %v2004, 7
      %v2071 = vrot.slane %v2005, 7
      %v2072 = vsel %vm290, %v2070, %v2071
      %v2073 = vrot.slane %v2006, 7
      %v2074 = vrot.slane %v2007, 7
      %v2075 = vsel %vm290, %v2073, %v2074
      %v2076 = vrot.slane %v2008, 7
      %v2077 = vrot.slane %v2009, 7
      %v2078 = vsel %vm290, %v2076, %v2077
      %v2079 = vrot.slane %v2010, 7
      %v2080 = vrot.slane %v2011, 7
      %v2081 = vsel %vm290, %v2079, %v2080
      %v2082 = vrot.slane %v2012, 7
      %v2083 = vrot.slane %v2013, 7
      %v2084 = vsel %vm290, %v2082, %v2083
      %v2085 = vrot.slane %v2014, 7
      %v2086 = vrot.slane %v2015, 7
      %v2087 = vsel %vm290, %v2085, %v2086
      %v2088 = vrot.slane %v2016, 7
      %v2089 = vrot.slane %v2017, 7
      %v2090 = vsel %vm290, %v2088, %v2089
      %v2091 = vrot.slane %v2018, 7
      %v2092 = vrot.slane %v2019, 7
      %v2093 = vsel %vm290, %v2091, %v2092
      %v2094 = vrot.slane %v2020, 7
      %v2095 = vrot.slane %v2021, 7
      %v2096 = vsel %vm290, %v2094, %v2095
      %v2097 = vrot.slane %v2022, 7
      %v2098 = vrot.slane %v2023, 7
      %v2099 = vsel %vm290, %v2097, %v2098
      %v2100 = vrot.slane %v2024, 7
      %v2101 = vrot.slane %v2025, 7
      %v2102 = vsel %vm290, %v2100, %v2101
      %v2103 = vrot.slane %v2026, 7
      %v2104 = vrot.slane %v2027, 7
      %v2105 = vsel %vm290, %v2103, %v2104
      %v2106 = vrot.slane %v2028, 7
      %v2107 = vrot.slane %v2029, 7
      %v2108 = vsel %vm290, %v2106, %v2107
      %v2109 = vrot.slane %v2030, 7
      %v2110 = vrot.slane %v2031, 7
      %v2111 = vsel %vm290, %v2109, %v2110
      %v2159 = vsel %vm290, 0.0, %v2064
      %v2160 = vsel %vm290, 0.0, %v2067
      %v2161 = vsel %vm290, 0.0, %v2070
      %v2162 = vsel %vm290, 0.0, %v2073
      %v2163 = vsel %vm290, 0.0, %v2076
      %v2164 = vsel %vm290, 0.0, %v2079
      %v2165 = vsel %vm290, 0.0, %v2082
      %v2166 = vsel %vm290, 0.0, %v2085
      %v2167 = vsel %vm290, 0.0, %v2088
      %v2168 = vsel %vm290, 0.0, %v2091
      %v2169 = vsel %vm290, 0.0, %v2094
      %v2170 = vsel %vm290, 0.0, %v2097
      %v2171 = vsel %vm290, 0.0, %v2100
      %v2172 = vsel %vm290, 0.0, %v2103
      %v2173 = vsel %vm290, 0.0, %v2106
      %v2174 = vsel %vm290, 0.0, %v2109
      %v2175 = vsel %vm290, %v2065, 0.0
      %v2176 = vsel %vm290, %v2068, 0.0
      %v2177 = vsel %vm290, %v2071, 0.0
      %v2178 = vsel %vm290, %v2074, 0.0
      %v2179 = vsel %vm290, %v2077, 0.0
      %v2180 = vsel %vm290, %v2080, 0.0
      %v2181 = vsel %vm290, %v2083, 0.0
      %v2182 = vsel %vm290, %v2086, 0.0
      %v2183 = vsel %vm290, %v2089, 0.0
      %v2184 = vsel %vm290, %v2092, 0.0
      %v2185 = vsel %vm290, %v2095, 0.0
      %v2186 = vsel %vm290, %v2098, 0.0
      %v2187 = vsel %vm290, %v2101, 0.0
      %v2188 = vsel %vm290, %v2104, 0.0
      %v2189 = vsel %vm290, %v2107, 0.0
      %v2190 = vsel %vm290, %v2110, 0.0
      %v2221 = vrot.slane %v2159, 1
      %v2222 = vrot.slane %v2066, 1
      %v2223 = vsel %vm456, %v2221, %v2222
      %v2224 = vrot.slane %v2175, 1
      %v2225 = vsel %vm456, %v2222, %v2224
      %v2226 = vrot.slane %v2160, 1
      %v2227 = vrot.slane %v2069, 1
      %v2228 = vsel %vm456, %v2226, %v2227
      %v2229 = vrot.slane %v2176, 1
      %v2230 = vsel %vm456, %v2227, %v2229
      %v2231 = vrot.slane %v2161, 1
      %v2232 = vrot.slane %v2072, 1
      %v2233 = vsel %vm456, %v2231, %v2232
      %v2234 = vrot.slane %v2177, 1
      %v2235 = vsel %vm456, %v2232, %v2234
      %v2236 = vrot.slane %v2162, 1
      %v2237 = vrot.slane %v2075, 1
      %v2238 = vsel %vm456, %v2236, %v2237
      %v2239 = vrot.slane %v2178, 1
      %v2240 = vsel %vm456, %v2237, %v2239
      %v2241 = vrot.slane %v2163, 1
      %v2242 = vrot.slane %v2078, 1
      %v2243 = vsel %vm456, %v2241, %v2242
      %v2244 = vrot.slane %v2179, 1
      %v2245 = vsel %vm456, %v2242, %v2244
      %v2246 = vrot.slane %v2164, 1
      %v2247 = vrot.slane %v2081, 1
      %v2248 = vsel %vm456, %v2246, %v2247
      %v2249 = vrot.slane %v2180, 1
      %v2250 = vsel %vm456, %v2247, %v2249
      %v2251 = vrot.slane %v2165, 1
      %v2252 = vrot.slane %v2084, 1
      %v2253 = vsel %vm456, %v2251, %v2252
      %v2254 = vrot.slane %v2181, 1
      %v2255 = vsel %vm456, %v2252, %v2254
      %v2256 = vrot.slane %v2166, 1
      %v2257 = vrot.slane %v2087, 1
      %v2258 = vsel %vm456, %v2256, %v2257
      %v2259 = vrot.slane %v2182, 1
      %v2260 = vsel %vm456, %v2257, %v2259
      %v2261 = vrot.slane %v2167, 1
      %v2262 = vrot.slane %v2090, 1
      %v2263 = vsel %vm456, %v2261, %v2262
      %v2264 = vrot.slane %v2183, 1
      %v2265 = vsel %vm456, %v2262, %v2264
      %v2266 = vrot.slane %v2168, 1
      %v2267 = vrot.slane %v2093, 1
      %v2268 = vsel %vm456, %v2266, %v2267
      %v2269 = vrot.slane %v2184, 1
      %v2270 = vsel %vm456, %v2267, %v2269
      %v2271 = vrot.slane %v2169, 1
      %v2272 = vrot.slane %v2096, 1
      %v2273 = vsel %vm456, %v2271, %v2272
      %v2274 = vrot.slane %v2185, 1
      %v2275 = vsel %vm456, %v2272, %v2274
      %v2276 = vrot.slane %v2170, 1
      %v2277 = vrot.slane %v2099, 1
      %v2278 = vsel %vm456, %v2276, %v2277
      %v2279 = vrot.slane %v2186, 1
      %v2280 = vsel %vm456, %v2277, %v2279
      %v2281 = vrot.slane %v2171, 1
      %v2282 = vrot.slane %v2102, 1
      %v2283 = vsel %vm456, %v2281, %v2282
      %v2284 = vrot.slane %v2187, 1
      %v2285 = vsel %vm456, %v2282, %v2284
      %v2286 = vrot.slane %v2172, 1
      %v2287 = vrot.slane %v2105, 1
      %v2288 = vsel %vm456, %v2286, %v2287
      %v2289 = vrot.slane %v2188, 1
      %v2290 = vsel %vm456, %v2287, %v2289
      %v2291 = vrot.slane %v2173, 1
      %v2292 = vrot.slane %v2108, 1
      %v2293 = vsel %vm456, %v2291, %v2292
      %v2294 = vrot.slane %v2189, 1
      %v2295 = vsel %vm456, %v2292, %v2294
      %2296 = vrot.lane.b32.xlu0 %v459, 8
      %v2297 = vpop.permute.xlu0 %2296
      %2298 = vrot.lane.b32.xlu0 %v461, 8
      %v2299 = vpop.permute.xlu0 %2298
      %2300 = vrot.lane.b32.xlu0 %v2223, 8
      %v2301 = vpop.permute.xlu0 %2300
      %2302 = vrot.lane.b32.xlu0 %v2225, 8
      %v2303 = vpop.permute.xlu0 %2302
      %2304 = vrot.lane.b32.xlu0 %v2228, 8
      %v2305 = vpop.permute.xlu0 %2304
      %2306 = vrot.lane.b32.xlu0 %v2230, 8
      %v2307 = vpop.permute.xlu0 %2306
      %2308 = vrot.lane.b32.xlu0 %v2233, 8
      %v2309 = vpop.permute.xlu0 %2308
      %2310 = vrot.lane.b32.xlu0 %v2235, 8
      %v2311 = vpop.permute.xlu0 %2310
      %2312 = vrot.lane.b32.xlu0 %v2238, 8
      %v2313 = vpop.permute.xlu0 %2312
      %2314 = vrot.lane.b32.xlu0 %v2240, 8
      %v2315 = vpop.permute.xlu0 %2314
      %2316 = vrot.lane.b32.xlu0 %v2243, 8
      %v2317 = vpop.permute.xlu0 %2316
      %2318 = vrot.lane.b32.xlu0 %v2245, 8
      %v2319 = vpop.permute.xlu0 %2318
      %2320 = vrot.lane.b32.xlu0 %v2248, 8
      %v2321 = vpop.permute.xlu0 %2320
      %2322 = vrot.lane.b32.xlu0 %v2250, 8
      %v2323 = vpop.permute.xlu0 %2322
      %2324 = vrot.lane.b32.xlu0 %v2253, 8
      %v2325 = vpop.permute.xlu0 %2324
      %2326 = vrot.lane.b32.xlu0 %v2255, 8
      %v2327 = vpop.permute.xlu0 %2326
      %2328 = vrot.lane.b32.xlu0 %v2258, 8
      %v2329 = vpop.permute.xlu0 %2328
      %2330 = vrot.lane.b32.xlu0 %v2260, 8
      %v2331 = vpop.permute.xlu0 %2330
      %2332 = vrot.lane.b32.xlu0 %v2263, 8
      %v2333 = vpop.permute.xlu0 %2332
      %2334 = vrot.lane.b32.xlu0 %v2265, 8
      %v2335 = vpop.permute.xlu0 %2334
      %2336 = vrot.lane.b32.xlu0 %v2268, 8
      %v2337 = vpop.permute.xlu0 %2336
      %2338 = vrot.lane.b32.xlu0 %v2270, 8
      %v2339 = vpop.permute.xlu0 %2338
      %2340 = vrot.lane.b32.xlu0 %v2273, 8
      %v2341 = vpop.permute.xlu0 %2340
      %2342 = vrot.lane.b32.xlu0 %v2275, 8
      %v2343 = vpop.permute.xlu0 %2342
      %2344 = vrot.lane.b32.xlu0 %v2278, 8
      %v2345 = vpop.permute.xlu0 %2344
      %2346 = vrot.lane.b32.xlu0 %v2280, 8
      %v2347 = vpop.permute.xlu0 %2346
      %2348 = vrot.lane.b32.xlu0 %v2283, 8
      %v2349 = vpop.permute.xlu0 %2348
      %2350 = vrot.lane.b32.xlu0 %v2285, 8
      %v2351 = vpop.permute.xlu0 %2350
      %2352 = vrot.lane.b32.xlu0 %v2288, 8
      %v2353 = vpop.permute.xlu0 %2352
      %2354 = vrot.lane.b32.xlu0 %v2290, 8
      %v2355 = vpop.permute.xlu0 %2354
      %2356 = vrot.lane.b32.xlu0 %v2293, 8
      %v2357 = vpop.permute.xlu0 %2356
      %2358 = vrot.lane.b32.xlu0 %v2295, 8
      %v2359 = vpop.permute.xlu0 %2358
      %v2392 = vrot.slane %v2159, 2
      %v2393 = vrot.slane %v2066, 2
      %v2394 = vsel %vm633, %v2392, %v2393
      %v2395 = vrot.slane %v2175, 2
      %v2396 = vsel %vm633, %v2393, %v2395
      %v2397 = vrot.slane %v2160, 2
      %v2398 = vrot.slane %v2069, 2
      %v2399 = vsel %vm633, %v2397, %v2398
      %v2400 = vrot.slane %v2176, 2
      %v2401 = vsel %vm633, %v2398, %v2400
      %v2402 = vrot.slane %v2161, 2
      %v2403 = vrot.slane %v2072, 2
      %v2404 = vsel %vm633, %v2402, %v2403
      %v2405 = vrot.slane %v2177, 2
      %v2406 = vsel %vm633, %v2403, %v2405
      %v2407 = vrot.slane %v2162, 2
      %v2408 = vrot.slane %v2075, 2
      %v2409 = vsel %vm633, %v2407, %v2408
      %v2410 = vrot.slane %v2178, 2
      %v2411 = vsel %vm633, %v2408, %v2410
      %v2412 = vrot.slane %v2163, 2
      %v2413 = vrot.slane %v2078, 2
      %v2414 = vsel %vm633, %v2412, %v2413
      %v2415 = vrot.slane %v2179, 2
      %v2416 = vsel %vm633, %v2413, %v2415
      %v2417 = vrot.slane %v2164, 2
      %v2418 = vrot.slane %v2081, 2
      %v2419 = vsel %vm633, %v2417, %v2418
      %v2420 = vrot.slane %v2180, 2
      %v2421 = vsel %vm633, %v2418, %v2420
      %v2422 = vrot.slane %v2165, 2
      %v2423 = vrot.slane %v2084, 2
      %v2424 = vsel %vm633, %v2422, %v2423
      %v2425 = vrot.slane %v2181, 2
      %v2426 = vsel %vm633, %v2423, %v2425
      %v2427 = vrot.slane %v2166, 2
      %v2428 = vrot.slane %v2087, 2
      %v2429 = vsel %vm633, %v2427, %v2428
      %v2430 = vrot.slane %v2182, 2
      %v2431 = vsel %vm633, %v2428, %v2430
      %v2432 = vrot.slane %v2167, 2
      %v2433 = vrot.slane %v2090, 2
      %v2434 = vsel %vm633, %v2432, %v2433
      %v2435 = vrot.slane %v2183, 2
      %v2436 = vsel %vm633, %v2433, %v2435
      %v2437 = vrot.slane %v2168, 2
      %v2438 = vrot.slane %v2093, 2
      %v2439 = vsel %vm633, %v2437, %v2438
      %v2440 = vrot.slane %v2184, 2
      %v2441 = vsel %vm633, %v2438, %v2440
      %v2442 = vrot.slane %v2169, 2
      %v2443 = vrot.slane %v2096, 2
      %v2444 = vsel %vm633, %v2442, %v2443
      %v2445 = vrot.slane %v2185, 2
      %v2446 = vsel %vm633, %v2443, %v2445
      %v2447 = vrot.slane %v2170, 2
      %v2448 = vrot.slane %v2099, 2
      %v2449 = vsel %vm633, %v2447, %v2448
      %v2450 = vrot.slane %v2186, 2
      %v2451 = vsel %vm633, %v2448, %v2450
      %v2452 = vrot.slane %v2171, 2
      %v2453 = vrot.slane %v2102, 2
      %v2454 = vsel %vm633, %v2452, %v2453
      %v2455 = vrot.slane %v2187, 2
      %v2456 = vsel %vm633, %v2453, %v2455
      %v2457 = vrot.slane %v2172, 2
      %v2458 = vrot.slane %v2105, 2
      %v2459 = vsel %vm633, %v2457, %v2458
      %v2460 = vrot.slane %v2188, 2
      %v2461 = vsel %vm633, %v2458, %v2460
      %v2462 = vrot.slane %v2173, 2
      %v2463 = vrot.slane %v2108, 2
      %v2464 = vsel %vm633, %v2462, %v2463
      %v2465 = vrot.slane %v2189, 2
      %v2466 = vsel %vm633, %v2463, %v2465
      %2467 = vrot.lane.b32.xlu0 %v636, 16
      %v2468 = vpop.permute.xlu0 %2467
      %2469 = vrot.lane.b32.xlu0 %v638, 16
      %v2470 = vpop.permute.xlu0 %2469
      %2471 = vrot.lane.b32.xlu0 %v2394, 16
      %v2472 = vpop.permute.xlu0 %2471
      %2473 = vrot.lane.b32.xlu0 %v2396, 16
      %v2474 = vpop.permute.xlu0 %2473
      %2475 = vrot.lane.b32.xlu0 %v2399, 16
      %v2476 = vpop.permute.xlu0 %2475
      %2477 = vrot.lane.b32.xlu0 %v2401, 16
      %v2478 = vpop.permute.xlu0 %2477
      %2479 = vrot.lane.b32.xlu0 %v2404, 16
      %v2480 = vpop.permute.xlu0 %2479
      %2481 = vrot.lane.b32.xlu0 %v2406, 16
      %v2482 = vpop.permute.xlu0 %2481
      %2483 = vrot.lane.b32.xlu0 %v2409, 16
      %v2484 = vpop.permute.xlu0 %2483
      %2485 = vrot.lane.b32.xlu0 %v2411, 16
      %v2486 = vpop.permute.xlu0 %2485
      %2487 = vrot.lane.b32.xlu0 %v2414, 16
      %v2488 = vpop.permute.xlu0 %2487
      %2489 = vrot.lane.b32.xlu0 %v2416, 16
      %v2490 = vpop.permute.xlu0 %2489
      %2491 = vrot.lane.b32.xlu0 %v2419, 16
      %v2492 = vpop.permute.xlu0 %2491
      %2493 = vrot.lane.b32.xlu0 %v2421, 16
      %v2494 = vpop.permute.xlu0 %2493
      %2495 = vrot.lane.b32.xlu0 %v2424, 16
      %v2496 = vpop.permute.xlu0 %2495
      %2497 = vrot.lane.b32.xlu0 %v2426, 16
      %v2498 = vpop.permute.xlu0 %2497
      %2499 = vrot.lane.b32.xlu0 %v2429, 16
      %v2500 = vpop.permute.xlu0 %2499
      %2501 = vrot.lane.b32.xlu0 %v2431, 16
      %v2502 = vpop.permute.xlu0 %2501
      %2503 = vrot.lane.b32.xlu0 %v2434, 16
      %v2504 = vpop.permute.xlu0 %2503
      %2505 = vrot.lane.b32.xlu0 %v2436, 16
      %v2506 = vpop.permute.xlu0 %2505
      %2507 = vrot.lane.b32.xlu0 %v2439, 16
      %v2508 = vpop.permute.xlu0 %2507
      %2509 = vrot.lane.b32.xlu0 %v2441, 16
      %v2510 = vpop.permute.xlu0 %2509
      %2511 = vrot.lane.b32.xlu0 %v2444, 16
      %v2512 = vpop.permute.xlu0 %2511
      %2513 = vrot.lane.b32.xlu0 %v2446, 16
      %v2514 = vpop.permute.xlu0 %2513
      %2515 = vrot.lane.b32.xlu0 %v2449, 16
      %v2516 = vpop.permute.xlu0 %2515
      %2517 = vrot.lane.b32.xlu0 %v2451, 16
      %v2518 = vpop.permute.xlu0 %2517
      %2519 = vrot.lane.b32.xlu0 %v2454, 16
      %v2520 = vpop.permute.xlu0 %2519
      %2521 = vrot.lane.b32.xlu0 %v2456, 16
      %v2522 = vpop.permute.xlu0 %2521
      %2523 = vrot.lane.b32.xlu0 %v2459, 16
      %v2524 = vpop.permute.xlu0 %2523
      %2525 = vrot.lane.b32.xlu0 %v2461, 16
      %v2526 = vpop.permute.xlu0 %2525
      %2527 = vrot.lane.b32.xlu0 %v2464, 16
      %v2528 = vpop.permute.xlu0 %2527
      %2529 = vrot.lane.b32.xlu0 %v2466, 16
      %v2530 = vpop.permute.xlu0 %2529
      %2564 = vrot.lane.b32.xlu0 %v2159, 24
      %v2565 = vpop.permute.xlu0 %2564
      %2566 = vrot.lane.b32.xlu0 %v2066, 24
      %v2567 = vpop.permute.xlu0 %2566
      %2568 = vrot.lane.b32.xlu0 %v2160, 24
      %v2569 = vpop.permute.xlu0 %2568
      %2570 = vrot.lane.b32.xlu0 %v2069, 24
      %v2571 = vpop.permute.xlu0 %2570
      %2572 = vrot.lane.b32.xlu0 %v2161, 24
      %v2573 = vpop.permute.xlu0 %2572
      %2574 = vrot.lane.b32.xlu0 %v2072, 24
      %v2575 = vpop.permute.xlu0 %2574
      %2576 = vrot.lane.b32.xlu0 %v2162, 24
      %v2577 = vpop.permute.xlu0 %2576
      %2578 = vrot.lane.b32.xlu0 %v2075, 24
      %v2579 = vpop.permute.xlu0 %2578
      %2580 = vrot.lane.b32.xlu0 %v2163, 24
      %v2581 = vpop.permute.xlu0 %2580
      %2582 = vrot.lane.b32.xlu0 %v2078, 24
      %v2583 = vpop.permute.xlu0 %2582
      %2584 = vrot.lane.b32.xlu0 %v2164, 24
      %v2585 = vpop.permute.xlu0 %2584
      %2586 = vrot.lane.b32.xlu0 %v2081, 24
      %v2587 = vpop.permute.xlu0 %2586
      %2588 = vrot.lane.b32.xlu0 %v2165, 24
      %v2589 = vpop.permute.xlu0 %2588
      %2590 = vrot.lane.b32.xlu0 %v2084, 24
      %v2591 = vpop.permute.xlu0 %2590
      %2592 = vrot.lane.b32.xlu0 %v2166, 24
      %v2593 = vpop.permute.xlu0 %2592
      %2594 = vrot.lane.b32.xlu0 %v2087, 24
      %v2595 = vpop.permute.xlu0 %2594
      %2596 = vrot.lane.b32.xlu0 %v2167, 24
      %v2597 = vpop.permute.xlu0 %2596
      %2598 = vrot.lane.b32.xlu0 %v2090, 24
      %v2599 = vpop.permute.xlu0 %2598
      %2600 = vrot.lane.b32.xlu0 %v2168, 24
      %v2601 = vpop.permute.xlu0 %2600
      %2602 = vrot.lane.b32.xlu0 %v2093, 24
      %v2603 = vpop.permute.xlu0 %2602
      %2604 = vrot.lane.b32.xlu0 %v2169, 24
      %v2605 = vpop.permute.xlu0 %2604
      %2606 = vrot.lane.b32.xlu0 %v2096, 24
      %v2607 = vpop.permute.xlu0 %2606
      %2608 = vrot.lane.b32.xlu0 %v2170, 24
      %v2609 = vpop.permute.xlu0 %2608
      %2610 = vrot.lane.b32.xlu0 %v2099, 24
      %v2611 = vpop.permute.xlu0 %2610
      %2612 = vrot.lane.b32.xlu0 %v2171, 24
      %v2613 = vpop.permute.xlu0 %2612
      %2614 = vrot.lane.b32.xlu0 %v2102, 24
      %v2615 = vpop.permute.xlu0 %2614
      %2616 = vrot.lane.b32.xlu0 %v2172, 24
      %v2617 = vpop.permute.xlu0 %2616
      %2618 = vrot.lane.b32.xlu0 %v2105, 24
      %v2619 = vpop.permute.xlu0 %2618
      %2620 = vrot.lane.b32.xlu0 %v2173, 24
      %v2621 = vpop.permute.xlu0 %2620
      %2622 = vrot.lane.b32.xlu0 %v2108, 24
      %v2623 = vpop.permute.xlu0 %2622
      %2624 = vrot.lane.b32.xlu0 %v2174, 24
      %v2625 = vpop.permute.xlu0 %2624
      %2626 = vrot.lane.b32.xlu0 %v2111, 24
      %v2627 = vpop.permute.xlu0 %2626
      %v2661 = vrot.slane %v2174, 1
      %v2662 = vrot.slane %v2111, 1
      %v2663 = vsel %vm456, %v2661, %v2662
      %v2664 = vrot.slane %v2190, 1
      %v2665 = vsel %vm456, %v2662, %v2664
      %2666 = vrot.lane.b32.xlu0 %v2223, 32
      %v2667 = vpop.permute.xlu0 %2666
      %2668 = vrot.lane.b32.xlu0 %v2225, 32
      %v2669 = vpop.permute.xlu0 %2668
      %2670 = vrot.lane.b32.xlu0 %v2228, 32
      %v2671 = vpop.permute.xlu0 %2670
      %2672 = vrot.lane.b32.xlu0 %v2230, 32
      %v2673 = vpop.permute.xlu0 %2672
      %2674 = vrot.lane.b32.xlu0 %v2233, 32
      %v2675 = vpop.permute.xlu0 %2674
      %2676 = vrot.lane.b32.xlu0 %v2235, 32
      %v2677 = vpop.permute.xlu0 %2676
      %2678 = vrot.lane.b32.xlu0 %v2238, 32
      %v2679 = vpop.permute.xlu0 %2678
      %2680 = vrot.lane.b32.xlu0 %v2240, 32
      %v2681 = vpop.permute.xlu0 %2680
      %2682 = vrot.lane.b32.xlu0 %v2243, 32
      %v2683 = vpop.permute.xlu0 %2682
      %2684 = vrot.lane.b32.xlu0 %v2245, 32
      %v2685 = vpop.permute.xlu0 %2684
      %2686 = vrot.lane.b32.xlu0 %v2248, 32
      %v2687 = vpop.permute.xlu0 %2686
      %2688 = vrot.lane.b32.xlu0 %v2250, 32
      %v2689 = vpop.permute.xlu0 %2688
      %2690 = vrot.lane.b32.xlu0 %v2253, 32
      %v2691 = vpop.permute.xlu0 %2690
      %2692 = vrot.lane.b32.xlu0 %v2255, 32
      %v2693 = vpop.permute.xlu0 %2692
      %2694 = vrot.lane.b32.xlu0 %v2258, 32
      %v2695 = vpop.permute.xlu0 %2694
      %2696 = vrot.lane.b32.xlu0 %v2260, 32
      %v2697 = vpop.permute.xlu0 %2696
      %2698 = vrot.lane.b32.xlu0 %v2263, 32
      %v2699 = vpop.permute.xlu0 %2698
      %2700 = vrot.lane.b32.xlu0 %v2265, 32
      %v2701 = vpop.permute.xlu0 %2700
      %2702 = vrot.lane.b32.xlu0 %v2268, 32
      %v2703 = vpop.permute.xlu0 %2702
      %2704 = vrot.lane.b32.xlu0 %v2270, 32
      %v2705 = vpop.permute.xlu0 %2704
      %2706 = vrot.lane.b32.xlu0 %v2273, 32
      %v2707 = vpop.permute.xlu0 %2706
      %2708 = vrot.lane.b32.xlu0 %v2275, 32
      %v2709 = vpop.permute.xlu0 %2708
      %2710 = vrot.lane.b32.xlu0 %v2278, 32
      %v2711 = vpop.permute.xlu0 %2710
      %2712 = vrot.lane.b32.xlu0 %v2280, 32
      %v2713 = vpop.permute.xlu0 %2712
      %2714 = vrot.lane.b32.xlu0 %v2283, 32
      %v2715 = vpop.permute.xlu0 %2714
      %2716 = vrot.lane.b32.xlu0 %v2285, 32
      %v2717 = vpop.permute.xlu0 %2716
      %2718 = vrot.lane.b32.xlu0 %v2288, 32
      %v2719 = vpop.permute.xlu0 %2718
      %2720 = vrot.lane.b32.xlu0 %v2290, 32
      %v2721 = vpop.permute.xlu0 %2720
      %2722 = vrot.lane.b32.xlu0 %v2293, 32
      %v2723 = vpop.permute.xlu0 %2722
      %2724 = vrot.lane.b32.xlu0 %v2295, 32
      %v2725 = vpop.permute.xlu0 %2724
      %2726 = vrot.lane.b32.xlu0 %v2663, 32
      %v2727 = vpop.permute.xlu0 %2726
      %2728 = vrot.lane.b32.xlu0 %v2665, 32
      %v2729 = vpop.permute.xlu0 %2728
      %v2762 = vrot.slane %v2174, 2
      %v2763 = vrot.slane %v2111, 2
      %v2764 = vsel %vm633, %v2762, %v2763
      %v2765 = vrot.slane %v2190, 2
      %v2766 = vsel %vm633, %v2763, %v2765
      %2767 = vrot.lane.b32.xlu0 %v2394, 40
      %v2768 = vpop.permute.xlu0 %2767
      %2769 = vrot.lane.b32.xlu0 %v2396, 40
      %v2770 = vpop.permute.xlu0 %2769
      %2771 = vrot.lane.b32.xlu0 %v2399, 40
      %v2772 = vpop.permute.xlu0 %2771
      %2773 = vrot.lane.b32.xlu0 %v2401, 40
      %v2774 = vpop.permute.xlu0 %2773
      %2775 = vrot.lane.b32.xlu0 %v2404, 40
      %v2776 = vpop.permute.xlu0 %2775
      %2777 = vrot.lane.b32.xlu0 %v2406, 40
      %v2778 = vpop.permute.xlu0 %2777
      %2779 = vrot.lane.b32.xlu0 %v2409, 40
      %v2780 = vpop.permute.xlu0 %2779
      %2781 = vrot.lane.b32.xlu0 %v2411, 40
      %v2782 = vpop.permute.xlu0 %2781
      %2783 = vrot.lane.b32.xlu0 %v2414, 40
      %v2784 = vpop.permute.xlu0 %2783
      %2785 = vrot.lane.b32.xlu0 %v2416, 40
      %v2786 = vpop.permute.xlu0 %2785
      %2787 = vrot.lane.b32.xlu0 %v2419, 40
      %v2788 = vpop.permute.xlu0 %2787
      %2789 = vrot.lane.b32.xlu0 %v2421, 40
      %v2790 = vpop.permute.xlu0 %2789
      %2791 = vrot.lane.b32.xlu0 %v2424, 40
      %v2792 = vpop.permute.xlu0 %2791
      %2793 = vrot.lane.b32.xlu0 %v2426, 40
      %v2794 = vpop.permute.xlu0 %2793
      %2795 = vrot.lane.b32.xlu0 %v2429, 40
      %v2796 = vpop.permute.xlu0 %2795
      %2797 = vrot.lane.b32.xlu0 %v2431, 40
      %v2798 = vpop.permute.xlu0 %2797
      %2799 = vrot.lane.b32.xlu0 %v2434, 40
      %v2800 = vpop.permute.xlu0 %2799
      %2801 = vrot.lane.b32.xlu0 %v2436, 40
      %v2802 = vpop.permute.xlu0 %2801
      %2803 = vrot.lane.b32.xlu0 %v2439, 40
      %v2804 = vpop.permute.xlu0 %2803
      %2805 = vrot.lane.b32.xlu0 %v2441, 40
      %v2806 = vpop.permute.xlu0 %2805
      %2807 = vrot.lane.b32.xlu0 %v2444, 40
      %v2808 = vpop.permute.xlu0 %2807
      %2809 = vrot.lane.b32.xlu0 %v2446, 40
      %v2810 = vpop.permute.xlu0 %2809
      %2811 = vrot.lane.b32.xlu0 %v2449, 40
      %v2812 = vpop.permute.xlu0 %2811
      %2813 = vrot.lane.b32.xlu0 %v2451, 40
      %v2814 = vpop.permute.xlu0 %2813
      %2815 = vrot.lane.b32.xlu0 %v2454, 40
      %v2816 = vpop.permute.xlu0 %2815
      %2817 = vrot.lane.b32.xlu0 %v2456, 40
      %v2818 = vpop.permute.xlu0 %2817
      %2819 = vrot.lane.b32.xlu0 %v2459, 40
      %v2820 = vpop.permute.xlu0 %2819
      %2821 = vrot.lane.b32.xlu0 %v2461, 40
      %v2822 = vpop.permute.xlu0 %2821
      %2823 = vrot.lane.b32.xlu0 %v2464, 40
      %v2824 = vpop.permute.xlu0 %2823
      %2825 = vrot.lane.b32.xlu0 %v2466, 40
      %v2826 = vpop.permute.xlu0 %2825
      %2827 = vrot.lane.b32.xlu0 %v2764, 40
      %v2828 = vpop.permute.xlu0 %2827
      %2829 = vrot.lane.b32.xlu0 %v2766, 40
      %v2830 = vpop.permute.xlu0 %2829
      %2863 = vrot.lane.b32.xlu0 %v2160, 48
      %v2864 = vpop.permute.xlu0 %2863
      %2865 = vrot.lane.b32.xlu0 %v2069, 48
      %v2866 = vpop.permute.xlu0 %2865
      %2867 = vrot.lane.b32.xlu0 %v2161, 48
      %v2868 = vpop.permute.xlu0 %2867
      %2869 = vrot.lane.b32.xlu0 %v2072, 48
      %v2870 = vpop.permute.xlu0 %2869
      %2871 = vrot.lane.b32.xlu0 %v2162, 48
      %v2872 = vpop.permute.xlu0 %2871
      %2873 = vrot.lane.b32.xlu0 %v2075, 48
      %v2874 = vpop.permute.xlu0 %2873
      %2875 = vrot.lane.b32.xlu0 %v2163, 48
      %v2876 = vpop.permute.xlu0 %2875
      %2877 = vrot.lane.b32.xlu0 %v2078, 48
      %v2878 = vpop.permute.xlu0 %2877
      %2879 = vrot.lane.b32.xlu0 %v2164, 48
      %v2880 = vpop.permute.xlu0 %2879
      %2881 = vrot.lane.b32.xlu0 %v2081, 48
      %v2882 = vpop.permute.xlu0 %2881
      %2883 = vrot.lane.b32.xlu0 %v2165, 48
      %v2884 = vpop.permute.xlu0 %2883
      %2885 = vrot.lane.b32.xlu0 %v2084, 48
      %v2886 = vpop.permute.xlu0 %2885
      %2887 = vrot.lane.b32.xlu0 %v2166, 48
      %v2888 = vpop.permute.xlu0 %2887
      %2889 = vrot.lane.b32.xlu0 %v2087, 48
      %v2890 = vpop.permute.xlu0 %2889
      %2891 = vrot.lane.b32.xlu0 %v2167, 48
      %v2892 = vpop.permute.xlu0 %2891
      %2893 = vrot.lane.b32.xlu0 %v2090, 48
      %v2894 = vpop.permute.xlu0 %2893
      %2895 = vrot.lane.b32.xlu0 %v2168, 48
      %v2896 = vpop.permute.xlu0 %2895
      %2897 = vrot.lane.b32.xlu0 %v2093, 48
      %v2898 = vpop.permute.xlu0 %2897
      %2899 = vrot.lane.b32.xlu0 %v2169, 48
      %v2900 = vpop.permute.xlu0 %2899
      %2901 = vrot.lane.b32.xlu0 %v2096, 48
      %v2902 = vpop.permute.xlu0 %2901
      %2903 = vrot.lane.b32.xlu0 %v2170, 48
      %v2904 = vpop.permute.xlu0 %2903
      %2905 = vrot.lane.b32.xlu0 %v2099, 48
      %v2906 = vpop.permute.xlu0 %2905
      %2907 = vrot.lane.b32.xlu0 %v2171, 48
      %v2908 = vpop.permute.xlu0 %2907
      %2909 = vrot.lane.b32.xlu0 %v2102, 48
      %v2910 = vpop.permute.xlu0 %2909
      %2911 = vrot.lane.b32.xlu0 %v2172, 48
      %v2912 = vpop.permute.xlu0 %2911
      %2913 = vrot.lane.b32.xlu0 %v2105, 48
      %v2914 = vpop.permute.xlu0 %2913
      %2915 = vrot.lane.b32.xlu0 %v2173, 48
      %v2916 = vpop.permute.xlu0 %2915
      %2917 = vrot.lane.b32.xlu0 %v2108, 48
      %v2918 = vpop.permute.xlu0 %2917
      %2919 = vrot.lane.b32.xlu0 %v2174, 48
      %v2920 = vpop.permute.xlu0 %2919
      %2921 = vrot.lane.b32.xlu0 %v2111, 48
      %v2922 = vpop.permute.xlu0 %2921
      %2923 = vrot.lane.b32.xlu0 %v390, 48
      %v2924 = vpop.permute.xlu0 %2923
      %2925 = vrot.lane.b32.xlu0 %v292, 48
      %v2926 = vpop.permute.xlu0 %2925
      %2959 = vrot.lane.b32.xlu0 %v2228, 56
      %v2960 = vpop.permute.xlu0 %2959
      %2961 = vrot.lane.b32.xlu0 %v2230, 56
      %v2962 = vpop.permute.xlu0 %2961
      %2963 = vrot.lane.b32.xlu0 %v2233, 56
      %v2964 = vpop.permute.xlu0 %2963
      %2965 = vrot.lane.b32.xlu0 %v2235, 56
      %v2966 = vpop.permute.xlu0 %2965
      %2967 = vrot.lane.b32.xlu0 %v2238, 56
      %v2968 = vpop.permute.xlu0 %2967
      %2969 = vrot.lane.b32.xlu0 %v2240, 56
      %v2970 = vpop.permute.xlu0 %2969
      %2971 = vrot.lane.b32.xlu0 %v2243, 56
      %v2972 = vpop.permute.xlu0 %2971
      %2973 = vrot.lane.b32.xlu0 %v2245, 56
      %v2974 = vpop.permute.xlu0 %2973
      %2975 = vrot.lane.b32.xlu0 %v2248, 56
      %v2976 = vpop.permute.xlu0 %2975
      %2977 = vrot.lane.b32.xlu0 %v2250, 56
      %v2978 = vpop.permute.xlu0 %2977
      %2979 = vrot.lane.b32.xlu0 %v2253, 56
      %v2980 = vpop.permute.xlu0 %2979
      %2981 = vrot.lane.b32.xlu0 %v2255, 56
      %v2982 = vpop.permute.xlu0 %2981
      %2983 = vrot.lane.b32.xlu0 %v2258, 56
      %v2984 = vpop.permute.xlu0 %2983
      %2985 = vrot.lane.b32.xlu0 %v2260, 56
      %v2986 = vpop.permute.xlu0 %2985
      %2987 = vrot.lane.b32.xlu0 %v2263, 56
      %v2988 = vpop.permute.xlu0 %2987
      %2989 = vrot.lane.b32.xlu0 %v2265, 56
      %v2990 = vpop.permute.xlu0 %2989
      %2991 = vrot.lane.b32.xlu0 %v2268, 56
      %v2992 = vpop.permute.xlu0 %2991
      %2993 = vrot.lane.b32.xlu0 %v2270, 56
      %v2994 = vpop.permute.xlu0 %2993
      %2995 = vrot.lane.b32.xlu0 %v2273, 56
      %v2996 = vpop.permute.xlu0 %2995
      %2997 = vrot.lane.b32.xlu0 %v2275, 56
      %v2998 = vpop.permute.xlu0 %2997
      %2999 = vrot.lane.b32.xlu0 %v2278, 56
      %v3000 = vpop.permute.xlu0 %2999
      %3001 = vrot.lane.b32.xlu0 %v2280, 56
      %v3002 = vpop.permute.xlu0 %3001
      %3003 = vrot.lane.b32.xlu0 %v2283, 56
      %v3004 = vpop.permute.xlu0 %3003
      %3005 = vrot.lane.b32.xlu0 %v2285, 56
      %v3006 = vpop.permute.xlu0 %3005
      %3007 = vrot.lane.b32.xlu0 %v2288, 56
      %v3008 = vpop.permute.xlu0 %3007
      %3009 = vrot.lane.b32.xlu0 %v2290, 56
      %v3010 = vpop.permute.xlu0 %3009
      %3011 = vrot.lane.b32.xlu0 %v2293, 56
      %v3012 = vpop.permute.xlu0 %3011
      %3013 = vrot.lane.b32.xlu0 %v2295, 56
      %v3014 = vpop.permute.xlu0 %3013
      %3015 = vrot.lane.b32.xlu0 %v2663, 56
      %v3016 = vpop.permute.xlu0 %3015
      %3017 = vrot.lane.b32.xlu0 %v2665, 56
      %v3018 = vpop.permute.xlu0 %3017
      %3019 = vrot.lane.b32.xlu0 %v459, 56
      %v3020 = vpop.permute.xlu0 %3019
      %3021 = vrot.lane.b32.xlu0 %v461, 56
      %v3022 = vpop.permute.xlu0 %3021
      %3055 = vrot.lane.b32.xlu0 %v2399, 64
      %v3056 = vpop.permute.xlu0 %3055
      %3057 = vrot.lane.b32.xlu0 %v2401, 64
      %v3058 = vpop.permute.xlu0 %3057
      %3059 = vrot.lane.b32.xlu0 %v2404, 64
      %v3060 = vpop.permute.xlu0 %3059
      %3061 = vrot.lane.b32.xlu0 %v2406, 64
      %v3062 = vpop.permute.xlu0 %3061
      %3063 = vrot.lane.b32.xlu0 %v2409, 64
      %v3064 = vpop.permute.xlu0 %3063
      %3065 = vrot.lane.b32.xlu0 %v2411, 64
      %v3066 = vpop.permute.xlu0 %3065
      %3067 = vrot.lane.b32.xlu0 %v2414, 64
      %v3068 = vpop.permute.xlu0 %3067
      %3069 = vrot.lane.b32.xlu0 %v2416, 64
      %v3070 = vpop.permute.xlu0 %3069
      %3071 = vrot.lane.b32.xlu0 %v2419, 64
      %v3072 = vpop.permute.xlu0 %3071
      %3073 = vrot.lane.b32.xlu0 %v2421, 64
      %v3074 = vpop.permute.xlu0 %3073
      %3075 = vrot.lane.b32.xlu0 %v2424, 64
      %v3076 = vpop.permute.xlu0 %3075
      %3077 = vrot.lane.b32.xlu0 %v2426, 64
      %v3078 = vpop.permute.xlu0 %3077
      %3079 = vrot.lane.b32.xlu0 %v2429, 64
      %v3080 = vpop.permute.xlu0 %3079
      %3081 = vrot.lane.b32.xlu0 %v2431, 64
      %v3082 = vpop.permute.xlu0 %3081
      %3083 = vrot.lane.b32.xlu0 %v2434, 64
      %v3084 = vpop.permute.xlu0 %3083
      %3085 = vrot.lane.b32.xlu0 %v2436, 64
      %v3086 = vpop.permute.xlu0 %3085
      %3087 = vrot.lane.b32.xlu0 %v2439, 64
      %v3088 = vpop.permute.xlu0 %3087
      %3089 = vrot.lane.b32.xlu0 %v2441, 64
      %v3090 = vpop.permute.xlu0 %3089
      %3091 = vrot.lane.b32.xlu0 %v2444, 64
      %v3092 = vpop.permute.xlu0 %3091
      %3093 = vrot.lane.b32.xlu0 %v2446, 64
      %v3094 = vpop.permute.xlu0 %3093
      %3095 = vrot.lane.b32.xlu0 %v2449, 64
      %v3096 = vpop.permute.xlu0 %3095
      %3097 = vrot.lane.b32.xlu0 %v2451, 64
      %v3098 = vpop.permute.xlu0 %3097
      %3099 = vrot.lane.b32.xlu0 %v2454, 64
      %v3100 = vpop.permute.xlu0 %3099
      %3101 = vrot.lane.b32.xlu0 %v2456, 64
      %v3102 = vpop.permute.xlu0 %3101
      %3103 = vrot.lane.b32.xlu0 %v2459, 64
      %v3104 = vpop.permute.xlu0 %3103
      %3105 = vrot.lane.b32.xlu0 %v2461, 64
      %v3106 = vpop.permute.xlu0 %3105
      %3107 = vrot.lane.b32.xlu0 %v2464, 64
      %v3108 = vpop.permute.xlu0 %3107
      %3109 = vrot.lane.b32.xlu0 %v2466, 64
      %v3110 = vpop.permute.xlu0 %3109
      %3111 = vrot.lane.b32.xlu0 %v2764, 64
      %v3112 = vpop.permute.xlu0 %3111
      %3113 = vrot.lane.b32.xlu0 %v2766, 64
      %v3114 = vpop.permute.xlu0 %3113
      %3115 = vrot.lane.b32.xlu0 %v636, 64
      %v3116 = vpop.permute.xlu0 %3115
      %3117 = vrot.lane.b32.xlu0 %v638, 64
      %v3118 = vpop.permute.xlu0 %3117
      %v3151 = vsel %vm1431, %v390, %v2297
      %v3152 = vsel %vm1431, %v292, %v2299
      %v3153 = vsel %vm1431, %v2159, %v2301
      %v3154 = vsel %vm1431, %v2066, %v2303
      %v3155 = vsel %vm1431, %v2160, %v2305
      %v3156 = vsel %vm1431, %v2069, %v2307
      %v3157 = vsel %vm1431, %v2161, %v2309
      %v3158 = vsel %vm1431, %v2072, %v2311
      %v3159 = vsel %vm1431, %v2162, %v2313
      %v3160 = vsel %vm1431, %v2075, %v2315
      %v3161 = vsel %vm1431, %v2163, %v2317
      %v3162 = vsel %vm1431, %v2078, %v2319
      %v3163 = vsel %vm1431, %v2164, %v2321
      %v3164 = vsel %vm1431, %v2081, %v2323
      %v3165 = vsel %vm1431, %v2165, %v2325
      %v3166 = vsel %vm1431, %v2084, %v2327
      %v3167 = vsel %vm1431, %v2166, %v2329
      %v3168 = vsel %vm1431, %v2087, %v2331
      %v3169 = vsel %vm1431, %v2167, %v2333
      %v3170 = vsel %vm1431, %v2090, %v2335
      %v3171 = vsel %vm1431, %v2168, %v2337
      %v3172 = vsel %vm1431, %v2093, %v2339
      %v3173 = vsel %vm1431, %v2169, %v2341
      %v3174 = vsel %vm1431, %v2096, %v2343
      %v3175 = vsel %vm1431, %v2170, %v2345
      %v3176 = vsel %vm1431, %v2099, %v2347
      %v3177 = vsel %vm1431, %v2171, %v2349
      %v3178 = vsel %vm1431, %v2102, %v2351
      %v3179 = vsel %vm1431, %v2172, %v2353
      %v3180 = vsel %vm1431, %v2105, %v2355
      %v3181 = vsel %vm1431, %v2173, %v2357
      %v3182 = vsel %vm1431, %v2108, %v2359
      %v3183 = vsel %vm1497, %v3151, %v2468
      %v3184 = vsel %vm1497, %v3152, %v2470
      %v3185 = vsel %vm1497, %v3153, %v2472
      %v3186 = vsel %vm1497, %v3154, %v2474
      %v3187 = vsel %vm1497, %v3155, %v2476
      %v3188 = vsel %vm1497, %v3156, %v2478
      %v3189 = vsel %vm1497, %v3157, %v2480
      %v3190 = vsel %vm1497, %v3158, %v2482
      %v3191 = vsel %vm1497, %v3159, %v2484
      %v3192 = vsel %vm1497, %v3160, %v2486
      %v3193 = vsel %vm1497, %v3161, %v2488
      %v3194 = vsel %vm1497, %v3162, %v2490
      %v3195 = vsel %vm1497, %v3163, %v2492
      %v3196 = vsel %vm1497, %v3164, %v2494
      %v3197 = vsel %vm1497, %v3165, %v2496
      %v3198 = vsel %vm1497, %v3166, %v2498
      %v3199 = vsel %vm1497, %v3167, %v2500
      %v3200 = vsel %vm1497, %v3168, %v2502
      %v3201 = vsel %vm1497, %v3169, %v2504
      %v3202 = vsel %vm1497, %v3170, %v2506
      %v3203 = vsel %vm1497, %v3171, %v2508
      %v3204 = vsel %vm1497, %v3172, %v2510
      %v3205 = vsel %vm1497, %v3173, %v2512
      %v3206 = vsel %vm1497, %v3174, %v2514
      %v3207 = vsel %vm1497, %v3175, %v2516
      %v3208 = vsel %vm1497, %v3176, %v2518
      %v3209 = vsel %vm1497, %v3177, %v2520
      %v3210 = vsel %vm1497, %v3178, %v2522
      %v3211 = vsel %vm1497, %v3179, %v2524
      %v3212 = vsel %vm1497, %v3180, %v2526
      %v3213 = vsel %vm1497, %v3181, %v2528
      %v3214 = vsel %vm1497, %v3182, %v2530
      %v3215 = vsel %vm1563, %v3183, %v2565
      %v3216 = vsel %vm1563, %v3184, %v2567
      %v3217 = vsel %vm1563, %v3185, %v2569
      %v3218 = vsel %vm1563, %v3186, %v2571
      %v3219 = vsel %vm1563, %v3187, %v2573
      %v3220 = vsel %vm1563, %v3188, %v2575
      %v3221 = vsel %vm1563, %v3189, %v2577
      %v3222 = vsel %vm1563, %v3190, %v2579
      %v3223 = vsel %vm1563, %v3191, %v2581
      %v3224 = vsel %vm1563, %v3192, %v2583
      %v3225 = vsel %vm1563, %v3193, %v2585
      %v3226 = vsel %vm1563, %v3194, %v2587
      %v3227 = vsel %vm1563, %v3195, %v2589
      %v3228 = vsel %vm1563, %v3196, %v2591
      %v3229 = vsel %vm1563, %v3197, %v2593
      %v3230 = vsel %vm1563, %v3198, %v2595
      %v3231 = vsel %vm1563, %v3199, %v2597
      %v3232 = vsel %vm1563, %v3200, %v2599
      %v3233 = vsel %vm1563, %v3201, %v2601
      %v3234 = vsel %vm1563, %v3202, %v2603
      %v3235 = vsel %vm1563, %v3203, %v2605
      %v3236 = vsel %vm1563, %v3204, %v2607
      %v3237 = vsel %vm1563, %v3205, %v2609
      %v3238 = vsel %vm1563, %v3206, %v2611
      %v3239 = vsel %vm1563, %v3207, %v2613
      %v3240 = vsel %vm1563, %v3208, %v2615
      %v3241 = vsel %vm1563, %v3209, %v2617
      %v3242 = vsel %vm1563, %v3210, %v2619
      %v3243 = vsel %vm1563, %v3211, %v2621
      %v3244 = vsel %vm1563, %v3212, %v2623
      %v3245 = vsel %vm1563, %v3213, %v2625
      %v3246 = vsel %vm1563, %v3214, %v2627
      %v3247 = vsel %vm1629, %v3215, %v2667
      %v3248 = vsel %vm1629, %v3216, %v2669
      %v3249 = vsel %vm1629, %v3217, %v2671
      %v3250 = vsel %vm1629, %v3218, %v2673
      %v3251 = vsel %vm1629, %v3219, %v2675
      %v3252 = vsel %vm1629, %v3220, %v2677
      %v3253 = vsel %vm1629, %v3221, %v2679
      %v3254 = vsel %vm1629, %v3222, %v2681
      %v3255 = vsel %vm1629, %v3223, %v2683
      %v3256 = vsel %vm1629, %v3224, %v2685
      %v3257 = vsel %vm1629, %v3225, %v2687
      %v3258 = vsel %vm1629, %v3226, %v2689
      %v3259 = vsel %vm1629, %v3227, %v2691
      %v3260 = vsel %vm1629, %v3228, %v2693
      %v3261 = vsel %vm1629, %v3229, %v2695
      %v3262 = vsel %vm1629, %v3230, %v2697
      %v3263 = vsel %vm1629, %v3231, %v2699
      %v3264 = vsel %vm1629, %v3232, %v2701
      %v3265 = vsel %vm1629, %v3233, %v2703
      %v3266 = vsel %vm1629, %v3234, %v2705
      %v3267 = vsel %vm1629, %v3235, %v2707
      %v3268 = vsel %vm1629, %v3236, %v2709
      %v3269 = vsel %vm1629, %v3237, %v2711
      %v3270 = vsel %vm1629, %v3238, %v2713
      %v3271 = vsel %vm1629, %v3239, %v2715
      %v3272 = vsel %vm1629, %v3240, %v2717
      %v3273 = vsel %vm1629, %v3241, %v2719
      %v3274 = vsel %vm1629, %v3242, %v2721
      %v3275 = vsel %vm1629, %v3243, %v2723
      %v3276 = vsel %vm1629, %v3244, %v2725
      %v3277 = vsel %vm1629, %v3245, %v2727
      %v3278 = vsel %vm1629, %v3246, %v2729
      %vm3279 = vcmask 326656
      %v3280 = vsel %vm3279, %v3247, %v2768
      %v3281 = vsel %vm3279, %v3248, %v2770
      %v3282 = vsel %vm3279, %v3249, %v2772
      %v3283 = vsel %vm3279, %v3250, %v2774
      %v3284 = vsel %vm3279, %v3251, %v2776
      %v3285 = vsel %vm3279, %v3252, %v2778
      %v3286 = vsel %vm3279, %v3253, %v2780
      %v3287 = vsel %vm3279, %v3254, %v2782
      %v3288 = vsel %vm3279, %v3255, %v2784
      %v3289 = vsel %vm3279, %v3256, %v2786
      %v3290 = vsel %vm3279, %v3257, %v2788
      %v3291 = vsel %vm3279, %v3258, %v2790
      %v3292 = vsel %vm3279, %v3259, %v2792
      %v3293 = vsel %vm3279, %v3260, %v2794
      %v3294 = vsel %vm3279, %v3261, %v2796
      %v3295 = vsel %vm3279, %v3262, %v2798
      %v3296 = vsel %vm3279, %v3263, %v2800
      %v3297 = vsel %vm3279, %v3264, %v2802
      %v3298 = vsel %vm3279, %v3265, %v2804
      %v3299 = vsel %vm3279, %v3266, %v2806
      %v3300 = vsel %vm3279, %v3267, %v2808
      %v3301 = vsel %vm3279, %v3268, %v2810
      %v3302 = vsel %vm3279, %v3269, %v2812
      %v3303 = vsel %vm3279, %v3270, %v2814
      %v3304 = vsel %vm3279, %v3271, %v2816
      %v3305 = vsel %vm3279, %v3272, %v2818
      %v3306 = vsel %vm3279, %v3273, %v2820
      %v3307 = vsel %vm3279, %v3274, %v2822
      %v3308 = vsel %vm3279, %v3275, %v2824
      %v3309 = vsel %vm3279, %v3276, %v2826
      %v3310 = vsel %vm3279, %v3277, %v2828
      %v3311 = vsel %vm3279, %v3278, %v2830
      %vm3312 = vcmask 392192
      %v3313 = vsel %vm3312, %v3280, %v2864
      %v3314 = vsel %vm3312, %v3281, %v2866
      %v3315 = vsel %vm3312, %v3282, %v2868
      %v3316 = vsel %vm3312, %v3283, %v2870
      %v3317 = vsel %vm3312, %v3284, %v2872
      %v3318 = vsel %vm3312, %v3285, %v2874
      %v3319 = vsel %vm3312, %v3286, %v2876
      %v3320 = vsel %vm3312, %v3287, %v2878
      %v3321 = vsel %vm3312, %v3288, %v2880
      %v3322 = vsel %vm3312, %v3289, %v2882
      %v3323 = vsel %vm3312, %v3290, %v2884
      %v3324 = vsel %vm3312, %v3291, %v2886
      %v3325 = vsel %vm3312, %v3292, %v2888
      %v3326 = vsel %vm3312, %v3293, %v2890
      %v3327 = vsel %vm3312, %v3294, %v2892
      %v3328 = vsel %vm3312, %v3295, %v2894
      %v3329 = vsel %vm3312, %v3296, %v2896
      %v3330 = vsel %vm3312, %v3297, %v2898
      %v3331 = vsel %vm3312, %v3298, %v2900
      %v3332 = vsel %vm3312, %v3299, %v2902
      %v3333 = vsel %vm3312, %v3300, %v2904
      %v3334 = vsel %vm3312, %v3301, %v2906
      %v3335 = vsel %vm3312, %v3302, %v2908
      %v3336 = vsel %vm3312, %v3303, %v2910
      %v3337 = vsel %vm3312, %v3304, %v2912
      %v3338 = vsel %vm3312, %v3305, %v2914
      %v3339 = vsel %vm3312, %v3306, %v2916
      %v3340 = vsel %vm3312, %v3307, %v2918
      %v3341 = vsel %vm3312, %v3308, %v2920
      %v3342 = vsel %vm3312, %v3309, %v2922
      %v3343 = vsel %vm3312, %v3310, %v2924
      %v3344 = vsel %vm3312, %v3311, %v2926
      %vm3345 = vcmask 457728
      %v3346 = vsel %vm3345, %v3313, %v2960
      %v3347 = vsel %vm3345, %v3314, %v2962
      %v3348 = vsel %vm3345, %v3315, %v2964
      %v3349 = vsel %vm3345, %v3316, %v2966
      %v3350 = vsel %vm3345, %v3317, %v2968
      %v3351 = vsel %vm3345, %v3318, %v2970
      %v3352 = vsel %vm3345, %v3319, %v2972
      %v3353 = vsel %vm3345, %v3320, %v2974
      %v3354 = vsel %vm3345, %v3321, %v2976
      %v3355 = vsel %vm3345, %v3322, %v2978
      %v3356 = vsel %vm3345, %v3323, %v2980
      %v3357 = vsel %vm3345, %v3324, %v2982
      %v3358 = vsel %vm3345, %v3325, %v2984
      %v3359 = vsel %vm3345, %v3326, %v2986
      %v3360 = vsel %vm3345, %v3327, %v2988
      %v3361 = vsel %vm3345, %v3328, %v2990
      %v3362 = vsel %vm3345, %v3329, %v2992
      %v3363 = vsel %vm3345, %v3330, %v2994
      %v3364 = vsel %vm3345, %v3331, %v2996
      %v3365 = vsel %vm3345, %v3332, %v2998
      %v3366 = vsel %vm3345, %v3333, %v3000
      %v3367 = vsel %vm3345, %v3334, %v3002
      %v3368 = vsel %vm3345, %v3335, %v3004
      %v3369 = vsel %vm3345, %v3336, %v3006
      %v3370 = vsel %vm3345, %v3337, %v3008
      %v3371 = vsel %vm3345, %v3338, %v3010
      %v3372 = vsel %vm3345, %v3339, %v3012
      %v3373 = vsel %vm3345, %v3340, %v3014
      %v3374 = vsel %vm3345, %v3341, %v3016
      %v3375 = vsel %vm3345, %v3342, %v3018
      %v3376 = vsel %vm3345, %v3343, %v3020
      %v3377 = vsel %vm3345, %v3344, %v3022
      %vm3378 = vcmask 523264
      %v3379 = vsel %vm3378, %v3346, %v3056
      %v3380 = vsel %vm3378, %v3347, %v3058
      %v3381 = vsel %vm3378, %v3348, %v3060
      %v3382 = vsel %vm3378, %v3349, %v3062
      %v3383 = vsel %vm3378, %v3350, %v3064
      %v3384 = vsel %vm3378, %v3351, %v3066
      %v3385 = vsel %vm3378, %v3352, %v3068
      %v3386 = vsel %vm3378, %v3353, %v3070
      %v3387 = vsel %vm3378, %v3354, %v3072
      %v3388 = vsel %vm3378, %v3355, %v3074
      %v3389 = vsel %vm3378, %v3356, %v3076
      %v3390 = vsel %vm3378, %v3357, %v3078
      %v3391 = vsel %vm3378, %v3358, %v3080
      %v3392 = vsel %vm3378, %v3359, %v3082
      %v3393 = vsel %vm3378, %v3360, %v3084
      %v3394 = vsel %vm3378, %v3361, %v3086
      %v3395 = vsel %vm3378, %v3362, %v3088
      %v3396 = vsel %vm3378, %v3363, %v3090
      %v3397 = vsel %vm3378, %v3364, %v3092
      %v3398 = vsel %vm3378, %v3365, %v3094
      %v3399 = vsel %vm3378, %v3366, %v3096
      %v3400 = vsel %vm3378, %v3367, %v3098
      %v3401 = vsel %vm3378, %v3368, %v3100
      %v3402 = vsel %vm3378, %v3369, %v3102
      %v3403 = vsel %vm3378, %v3370, %v3104
      %v3404 = vsel %vm3378, %v3371, %v3106
      %v3405 = vsel %vm3378, %v3372, %v3108
      %v3406 = vsel %vm3378, %v3373, %v3110
      %v3407 = vsel %vm3378, %v3374, %v3112
      %v3408 = vsel %vm3378, %v3375, %v3114
      %v3409 = vsel %vm3378, %v3376, %v3116
      %v3410 = vsel %vm3378, %v3377, %v3118
      %v3411 = vld [vmem:[%s3] sm:$0xff]
      %v3412 = vld [vmem:[%s3 + $0x8] sm:$0xff]
      %v3413 = vld [vmem:[%s3 + $0x10] sm:$0xff]
      %v3414 = vld [vmem:[%s3 + $0x18] sm:$0xff]
      %v3415 = vld [vmem:[%s3 + $0x20] sm:$0xff]
      %v3416 = vld [vmem:[%s3 + $0x28] sm:$0xff]
      %v3417 = vld [vmem:[%s3 + $0x30] sm:$0xff]
      %v3418 = vld [vmem:[%s3 + $0x38] sm:$0xff]
      %v3419 = vld [vmem:[%s3 + $0x40] sm:$0xff]
      %v3420 = vld [vmem:[%s4] sm:$0x1]
      %v3422 = vlaneseq
      %v3423 = vshrl.u32 %v3422, 7
      %v3424 = vsub.s32 0, %v3423
      %v3425 = vrot.slane %v3420, %v3424
      %vm3427 = vcmask 588800
      %v3429 = vsel %vm3427, %v3379, 0
      %v3432 = vsel %vm3427, %v3380, 0
      %v3435 = vsel %vm3427, %v3381, 0
      %v3438 = vsel %vm3427, %v3382, 0
      %v3441 = vsel %vm3427, %v3383, 0
      %v3444 = vsel %vm3427, %v3384, 0
      %v3447 = vsel %vm3427, %v3385, 0
      %v3450 = vsel %vm3427, %v3386, 0
      %v3453 = vsel %vm3427, %v3387, 0
      %v3456 = vsel %vm3427, %v3388, 0
      %v3459 = vsel %vm3427, %v3389, 0
      %v3462 = vsel %vm3427, %v3390, 0
      %v3465 = vsel %vm3427, %v3391, 0
      %v3468 = vsel %vm3427, %v3392, 0
      %v3471 = vsel %vm3427, %v3393, 0
      %v3474 = vsel %vm3427, %v3394, 0
      %v3477 = vsel %vm3427, %v3395, 0
      %v3480 = vsel %vm3427, %v3396, 0
      %v3483 = vsel %vm3427, %v3397, 0
      %v3486 = vsel %vm3427, %v3398, 0
      %v3489 = vsel %vm3427, %v3399, 0
      %v3492 = vsel %vm3427, %v3400, 0
      %v3495 = vsel %vm3427, %v3401, 0
      %v3498 = vsel %vm3427, %v3402, 0
      %v3501 = vsel %vm3427, %v3403, 0
      %v3504 = vsel %vm3427, %v3404, 0
      %v3507 = vsel %vm3427, %v3405, 0
      %v3510 = vsel %vm3427, %v3406, 0
      %v3513 = vsel %vm3427, %v3407, 0
      %v3516 = vsel %vm3427, %v3408, 0
      %v3519 = vsel %vm3427, %v3409, 0
      %v3522 = vsel %vm3427, %v3410, 0
      %3524 = vmatprep.subr.mxu0 0.0
      %3525 = vmatpush1.msra.mxu0 0.0
      %3526 = vmatprep.subr.mxu0 0.0
      %3527 = vmatpush1.msra.mxu0 0.0
      %3528 = vmatprep.subr.mxu0 0.0
      %3529 = vmatpush1.msra.mxu0 0.0
      %3530 = vmatprep.subr.mxu0 0.0
      %3531 = vmatpush1.msra.mxu0 0.0
      %3532 = vmatprep.subr.mxu0 0.0
      %3533 = vmatpush1.msra.mxu0 0.0
      %3534 = vmatprep.subr.mxu0 0.0
      %3535 = vmatpush1.msra.mxu0 0.0
      %3536 = vmatprep.subr.mxu0 0.0
      %3537 = vmatpush1.msra.mxu0 0.0
      %3538 = vmatprep.subr.mxu0 0.0
      %3539 = vmatpush1.msra.mxu0 %v3419
      %3540 = vmatprep.subr.mxu0 0.0
      %3541 = vmatpush1.msra.mxu0 %v3418
      %3542 = vmatprep.subr.mxu0 0.0
      %3543 = vmatpush1.msra.mxu0 %v3417
      %3544 = vmatprep.subr.mxu0 0.0
      %3545 = vmatpush1.msra.mxu0 %v3416
      %3546 = vmatprep.subr.mxu0 0.0
      %3547 = vmatpush1.msra.mxu0 %v3415
      %3548 = vmatprep.subr.mxu0 0.0
      %3549 = vmatpush1.msra.mxu0 %v3414
      %3550 = vmatprep.subr.mxu0 0.0
      %3551 = vmatpush1.msra.mxu0 %v3413
      %3552 = vmatprep.subr.mxu0 0.0
      %3553 = vmatpush1.msra.mxu0 %v3412
      %3554 = vmatprep.subr.mxu0 0.0
      %3555 = vmatpush1.msra.mxu0 %v3411
      %3556 = vmatprep.subr.mxu0 0.0
      %3557 = vmatpush2.msra.mxu0 0.0
      %3558 = vmatprep.subr.mxu0 0.0
      %3559 = vmatpush2.msra.mxu0 0.0
      %3560 = vmatprep.subr.mxu0 0.0
      %3561 = vmatpush2.msra.mxu0 0.0
      %3562 = vmatprep.subr.mxu0 0.0
      %3563 = vmatpush2.msra.mxu0 0.0
      %3564 = vmatprep.subr.mxu0 0.0
      %3565 = vmatpush2.msra.mxu0 0.0
      %3566 = vmatprep.subr.mxu0 0.0
      %3567 = vmatpush2.msra.mxu0 0.0
      %3568 = vmatprep.subr.mxu0 0.0
      %3569 = vmatpush2.msra.mxu0 0.0
      %3570 = vmatprep.subr.mxu0 0.0
      %3571 = vmatpush2.msra.mxu0 0.0
      %3572 = vmatprep.subr.mxu0 0.0
      %3573 = vmatpush2.msra.mxu0 0.0
      %3574 = vmatprep.subr.mxu0 0.0
      %3575 = vmatpush2.msra.mxu0 0.0
      %3576 = vmatprep.subr.mxu0 0.0
      %3577 = vmatpush2.msra.mxu0 0.0
      %3578 = vmatprep.subr.mxu0 0.0
      %3579 = vmatpush2.msra.mxu0 0.0
      %3580 = vmatprep.subr.mxu0 0.0
      %3581 = vmatpush2.msra.mxu0 0.0
      %3582 = vmatprep.subr.mxu0 0.0
      %3583 = vmatpush2.msra.mxu0 0.0
      %3584 = vmatprep.subr.mxu0 0.0
      %3585 = vmatpush2.msra.mxu0 0.0
      %3586 = vmatprep.subr.mxu0 0.0
      %3587 = vmatpush2.msra.mxu0 0.0
      %3588 = vmatprep.mubr.f32.mxu0 0.0
      %3589 = vmatmul.mubr.f32.gmra.mxu0 %v3429
      %v3590 = vpop.f32.mrf.mxu0
      %v3591 = vadd.f32 %v3425, %v3590
      %v3592 = vpop.f32.mrf.mxu0
      %3593 = vmatprep.mubr.f32.mxu0 0.0
      %3594 = vmatmul.mubr.f32.gmra.mxu0 %v3432
      %v3595 = vpop.f32.mrf.mxu0
      %v3596 = vadd.f32 %v3425, %v3595
      %v3597 = vpop.f32.mrf.mxu0
      %3598 = vmatprep.mubr.f32.mxu0 0.0
      %3599 = vmatmul.mubr.f32.gmra.mxu0 %v3435
      %v3600 = vpop.f32.mrf.mxu0
      %v3601 = vadd.f32 %v3425, %v3600
      %v3602 = vpop.f32.mrf.mxu0
      %3603 = vmatprep.mubr.f32.mxu0 0.0
      %3604 = vmatmul.mubr.f32.gmra.mxu0 %v3438
      %v3605 = vpop.f32.mrf.mxu0
      %v3606 = vadd.f32 %v3425, %v3605
      %v3607 = vpop.f32.mrf.mxu0
      %3608 = vmatprep.mubr.f32.mxu0 0.0
      %3609 = vmatmul.mubr.f32.gmra.mxu0 %v3441
      %v3610 = vpop.f32.mrf.mxu0
      %v3611 = vadd.f32 %v3425, %v3610
      %v3612 = vpop.f32.mrf.mxu0
      %3613 = vmatprep.mubr.f32.mxu0 0.0
      %3614 = vmatmul.mubr.f32.gmra.mxu0 %v3444
      %v3615 = vpop.f32.mrf.mxu0
      %v3616 = vadd.f32 %v3425, %v3615
      %v3617 = vpop.f32.mrf.mxu0
      %3618 = vmatprep.mubr.f32.mxu0 0.0
      %3619 = vmatmul.mubr.f32.gmra.mxu0 %v3447
      %v3620 = vpop.f32.mrf.mxu0
      %v3621 = vadd.f32 %v3425, %v3620
      %v3622 = vpop.f32.mrf.mxu0
      %3623 = vmatprep.mubr.f32.mxu0 0.0
      %3624 = vmatmul.mubr.f32.gmra.mxu0 %v3450
      %v3625 = vpop.f32.mrf.mxu0
      %v3626 = vadd.f32 %v3425, %v3625
      %v3627 = vpop.f32.mrf.mxu0
      %3628 = vmatprep.mubr.f32.mxu0 0.0
      %3629 = vmatmul.mubr.f32.gmra.mxu0 %v3453
      %v3630 = vpop.f32.mrf.mxu0
      %v3631 = vadd.f32 %v3425, %v3630
      %v3632 = vpop.f32.mrf.mxu0
      %3633 = vmatprep.mubr.f32.mxu0 0.0
      %3634 = vmatmul.mubr.f32.gmra.mxu0 %v3456
      %v3635 = vpop.f32.mrf.mxu0
      %v3636 = vadd.f32 %v3425, %v3635
      %v3637 = vpop.f32.mrf.mxu0
      %3638 = vmatprep.mubr.f32.mxu0 0.0
      %3639 = vmatmul.mubr.f32.gmra.mxu0 %v3459
      %v3640 = vpop.f32.mrf.mxu0
      %v3641 = vadd.f32 %v3425, %v3640
      %v3642 = vpop.f32.mrf.mxu0
      %3643 = vmatprep.mubr.f32.mxu0 0.0
      %3644 = vmatmul.mubr.f32.gmra.mxu0 %v3462
      %v3645 = vpop.f32.mrf.mxu0
      %v3646 = vadd.f32 %v3425, %v3645
      %v3647 = vpop.f32.mrf.mxu0
      %3648 = vmatprep.mubr.f32.mxu0 0.0
      %3649 = vmatmul.mubr.f32.gmra.mxu0 %v3465
      %v3650 = vpop.f32.mrf.mxu0
      %v3651 = vadd.f32 %v3425, %v3650
      %v3652 = vpop.f32.mrf.mxu0
      %3653 = vmatprep.mubr.f32.mxu0 0.0
      %3654 = vmatmul.mubr.f32.gmra.mxu0 %v3468
      %v3655 = vpop.f32.mrf.mxu0
      %v3656 = vadd.f32 %v3425, %v3655
      %v3657 = vpop.f32.mrf.mxu0
      %3658 = vmatprep.mubr.f32.mxu0 0.0
      %3659 = vmatmul.mubr.f32.gmra.mxu0 %v3471
      %v3660 = vpop.f32.mrf.mxu0
      %v3661 = vadd.f32 %v3425, %v3660
      %v3662 = vpop.f32.mrf.mxu0
      %3663 = vmatprep.mubr.f32.mxu0 0.0
      %3664 = vmatmul.mubr.f32.gmra.mxu0 %v3474
      %v3665 = vpop.f32.mrf.mxu0
      %v3666 = vadd.f32 %v3425, %v3665
      %v3667 = vpop.f32.mrf.mxu0
      %3668 = vmatprep.mubr.f32.mxu0 0.0
      %3669 = vmatmul.mubr.f32.gmra.mxu0 %v3477
      %v3670 = vpop.f32.mrf.mxu0
      %v3671 = vadd.f32 %v3425, %v3670
      %v3672 = vpop.f32.mrf.mxu0
      %3673 = vmatprep.mubr.f32.mxu0 0.0
      %3674 = vmatmul.mubr.f32.gmra.mxu0 %v3480
      %v3675 = vpop.f32.mrf.mxu0
      %v3676 = vadd.f32 %v3425, %v3675
      %v3677 = vpop.f32.mrf.mxu0
      %3678 = vmatprep.mubr.f32.mxu0 0.0
      %3679 = vmatmul.mubr.f32.gmra.mxu0 %v3483
      %v3680 = vpop.f32.mrf.mxu0
      %v3681 = vadd.f32 %v3425, %v3680
      %v3682 = vpop.f32.mrf.mxu0
      %3683 = vmatprep.mubr.f32.mxu0 0.0
      %3684 = vmatmul.mubr.f32.gmra.mxu0 %v3486
      %v3685 = vpop.f32.mrf.mxu0
      %v3686 = vadd.f32 %v3425, %v3685
      %v3687 = vpop.f32.mrf.mxu0
      %3688 = vmatprep.mubr.f32.mxu0 0.0
      %3689 = vmatmul.mubr.f32.gmra.mxu0 %v3489
      %v3690 = vpop.f32.mrf.mxu0
      %v3691 = vadd.f32 %v3425, %v3690
      %v3692 = vpop.f32.mrf.mxu0
      %3693 = vmatprep.mubr.f32.mxu0 0.0
      %3694 = vmatmul.mubr.f32.gmra.mxu0 %v3492
      %v3695 = vpop.f32.mrf.mxu0
      %v3696 = vadd.f32 %v3425, %v3695
      %v3697 = vpop.f32.mrf.mxu0
      %3698 = vmatprep.mubr.f32.mxu0 0.0
      %3699 = vmatmul.mubr.f32.gmra.mxu0 %v3495
      %v3700 = vpop.f32.mrf.mxu0
      %v3701 = vadd.f32 %v3425, %v3700
      %v3702 = vpop.f32.mrf.mxu0
      %3703 = vmatprep.mubr.f32.mxu0 0.0
      %3704 = vmatmul.mubr.f32.gmra.mxu0 %v3498
      %v3705 = vpop.f32.mrf.mxu0
      %v3706 = vadd.f32 %v3425, %v3705
      %v3707 = vpop.f32.mrf.mxu0
      %3708 = vmatprep.mubr.f32.mxu0 0.0
      %3709 = vmatmul.mubr.f32.gmra.mxu0 %v3501
      %v3710 = vpop.f32.mrf.mxu0
      %v3711 = vadd.f32 %v3425, %v3710
      %v3712 = vpop.f32.mrf.mxu0
      %3713 = vmatprep.mubr.f32.mxu0 0.0
      %3714 = vmatmul.mubr.f32.gmra.mxu0 %v3504
      %v3715 = vpop.f32.mrf.mxu0
      %v3716 = vadd.f32 %v3425, %v3715
      %v3717 = vpop.f32.mrf.mxu0
      %3718 = vmatprep.mubr.f32.mxu0 0.0
      %3719 = vmatmul.mubr.f32.gmra.mxu0 %v3507
      %v3720 = vpop.f32.mrf.mxu0
      %v3721 = vadd.f32 %v3425, %v3720
      %v3722 = vpop.f32.mrf.mxu0
      %3723 = vmatprep.mubr.f32.mxu0 0.0
      %3724 = vmatmul.mubr.f32.gmra.mxu0 %v3510
      %v3725 = vpop.f32.mrf.mxu0
      %v3726 = vadd.f32 %v3425, %v3725
      %v3727 = vpop.f32.mrf.mxu0
      %3728 = vmatprep.mubr.f32.mxu0 0.0
      %3729 = vmatmul.mubr.f32.gmra.mxu0 %v3513
      %v3730 = vpop.f32.mrf.mxu0
      %v3731 = vadd.f32 %v3425, %v3730
      %v3732 = vpop.f32.mrf.mxu0
      %3733 = vmatprep.mubr.f32.mxu0 0.0
      %3734 = vmatmul.mubr.f32.gmra.mxu0 %v3516
      %v3735 = vpop.f32.mrf.mxu0
      %v3736 = vadd.f32 %v3425, %v3735
      %v3737 = vpop.f32.mrf.mxu0
      %3738 = vmatprep.mubr.f32.mxu0 0.0
      %3739 = vmatmul.mubr.f32.gmra.mxu0 %v3519
      %v3740 = vpop.f32.mrf.mxu0
      %v3741 = vadd.f32 %v3425, %v3740
      %v3742 = vpop.f32.mrf.mxu0
      %3743 = vmatprep.mubr.f32.mxu0 0.0
      %3744 = vmatmul.mubr.f32.gmra.mxu0 %v3522
      %v3745 = vpop.f32.mrf.mxu0
      %v3746 = vadd.f32 %v3425, %v3745
      %v3747 = vpop.f32.mrf.mxu0
      %3748 = vdwg.mxu0
      %v3749 = vmax.f32 %v3591, 0.0
      %v3750 = vmax.f32 %v3596, 0.0
      %v3751 = vmax.f32 %v3601, 0.0
      %v3752 = vmax.f32 %v3606, 0.0
      %v3753 = vmax.f32 %v3611, 0.0
      %v3754 = vmax.f32 %v3616, 0.0
      %v3755 = vmax.f32 %v3621, 0.0
      %v3756 = vmax.f32 %v3626, 0.0
      %v3757 = vmax.f32 %v3631, 0.0
      %v3758 = vmax.f32 %v3636, 0.0
      %v3759 = vmax.f32 %v3641, 0.0
      %v3760 = vmax.f32 %v3646, 0.0
      %v3761 = vmax.f32 %v3651, 0.0
      %v3762 = vmax.f32 %v3656, 0.0
      %v3763 = vmax.f32 %v3661, 0.0
      %v3764 = vmax.f32 %v3666, 0.0
      %v3765 = vmax.f32 %v3671, 0.0
      %v3766 = vmax.f32 %v3676, 0.0
      %v3767 = vmax.f32 %v3681, 0.0
      %v3768 = vmax.f32 %v3686, 0.0
      %v3769 = vmax.f32 %v3691, 0.0
      %v3770 = vmax.f32 %v3696, 0.0
      %v3771 = vmax.f32 %v3701, 0.0
      %v3772 = vmax.f32 %v3706, 0.0
      %v3773 = vmax.f32 %v3711, 0.0
      %v3774 = vmax.f32 %v3716, 0.0
      %v3775 = vmax.f32 %v3721, 0.0
      %v3776 = vmax.f32 %v3726, 0.0
      %v3777 = vmax.f32 %v3731, 0.0
      %v3778 = vmax.f32 %v3736, 0.0
      %v3779 = vmax.f32 %v3741, 0.0
      %v3780 = vmax.f32 %v3746, 0.0
      %3781 = vst.msk [vmem:[%s224] sm:$0xff] %vm1431, %v3749
      %3782 = vst.msk [vmem:[%s224 + $0x8] sm:$0xff] %vm1431, %v3750
      %3783 = vst.msk [vmem:[%s224 + $0x10] sm:$0xff] %vm1431, %v3751
      %3784 = vst.msk [vmem:[%s224 + $0x18] sm:$0xff] %vm1431, %v3752
      %3785 = vst.msk [vmem:[%s224 + $0x20] sm:$0xff] %vm1431, %v3753
      %3786 = vst.msk [vmem:[%s224 + $0x28] sm:$0xff] %vm1431, %v3754
      %3787 = vst.msk [vmem:[%s224 + $0x30] sm:$0xff] %vm1431, %v3755
      %3788 = vst.msk [vmem:[%s224 + $0x38] sm:$0xff] %vm1431, %v3756
      %3789 = vst.msk [vmem:[%s224 + $0x40] sm:$0xff] %vm1431, %v3757
      %3790 = vst.msk [vmem:[%s224 + $0x48] sm:$0xff] %vm1431, %v3758
      %3791 = vst.msk [vmem:[%s224 + $0x50] sm:$0xff] %vm1431, %v3759
      %3792 = vst.msk [vmem:[%s224 + $0x58] sm:$0xff] %vm1431, %v3760
      %3793 = vst.msk [vmem:[%s224 + $0x60] sm:$0xff] %vm1431, %v3761
      %3794 = vst.msk [vmem:[%s224 + $0x68] sm:$0xff] %vm1431, %v3762
      %3795 = vst.msk [vmem:[%s224 + $0x70] sm:$0xff] %vm1431, %v3763
      %3796 = vst.msk [vmem:[%s224 + $0x78] sm:$0xff] %vm1431, %v3764
      %3797 = vst.msk [vmem:[%s224 + $0x80] sm:$0xff] %vm1431, %v3765
      %3798 = vst.msk [vmem:[%s224 + $0x88] sm:$0xff] %vm1431, %v3766
      %3799 = vst.msk [vmem:[%s224 + $0x90] sm:$0xff] %vm1431, %v3767
      %3800 = vst.msk [vmem:[%s224 + $0x98] sm:$0xff] %vm1431, %v3768
      %3801 = vst.msk [vmem:[%s224 + $0xa0] sm:$0xff] %vm1431, %v3769
      %3802 = vst.msk [vmem:[%s224 + $0xa8] sm:$0xff] %vm1431, %v3770
      %3803 = vst.msk [vmem:[%s224 + $0xb0] sm:$0xff] %vm1431, %v3771
      %3804 = vst.msk [vmem:[%s224 + $0xb8] sm:$0xff] %vm1431, %v3772
      %3805 = vst.msk [vmem:[%s224 + $0xc0] sm:$0xff] %vm1431, %v3773
      %3806 = vst.msk [vmem:[%s224 + $0xc8] sm:$0xff] %vm1431, %v3774
      %3807 = vst.msk [vmem:[%s224 + $0xd0] sm:$0xff] %vm1431, %v3775
      %3808 = vst.msk [vmem:[%s224 + $0xd8] sm:$0xff] %vm1431, %v3776
      %3809 = vst.msk [vmem:[%s224 + $0xe0] sm:$0xff] %vm1431, %v3777
      %3810 = vst.msk [vmem:[%s224 + $0xe8] sm:$0xff] %vm1431, %v3778
      %3811 = vst.msk [vmem:[%s224 + $0xf0] sm:$0xff] %vm1431, %v3779
      %3812 = vst.msk [vmem:[%s224 + $0xf8] sm:$0xff] %vm1431, %v3780
      %p3813 = scmp.lt.s32.totalorder %s16, 1
      %s3814 = scalar_select %p3813, %s16, 1
      %s3815 = smul.addr %s3814, 32
      %s3816 = smul.addr %s3815, 8
      %s3817 = scalar_lea.vmem %s5, %s3816
      // Predicated region
      $region41: #{tpu_custom_call.1} parent=39 // pred_check
        %p3818 = pneg %p144
      $region42: #{tpu_custom_call.1} parent=39 // pred_check_branch
        %3820 = sbr.rel (%p3818) target = $region44
      $region43: #{tpu_custom_call.1} parent=39 // pred_region
        _
      $region44: #{tpu_custom_call.1} parent=39 // pred_fallthru
        _
    $region40: #{tpu_custom_call.1} parent=5 // pred_fallthru
      _
    %p3821 = scmp.le.s32.totalorder 2, %s11
    // Predicated region
    $region45: #{tpu_custom_call.1} parent=5 // pred_check
      %p3822 = pneg %p3821
    $region46: #{tpu_custom_call.1} parent=5 // pred_check_branch
      %3824 = sbr.rel (%p3822) target = $region48
    $region47: #{tpu_custom_call.1} parent=5 // pred_region
      %s3825 = ssub.s32 %s11, 2
      // Predicated region
      $region49: #{tpu_custom_call.1} parent=47 // pred_check
        %p3826 = pneg %p150
      $region50: #{tpu_custom_call.1} parent=47 // pred_check_branch
        %3828 = sbr.rel (%p3826) target = $region52
      $region51: #{tpu_custom_call.1} parent=47 // pred_region
        %p3829 = scmp.lt.s32.totalorder %s17, 1
        %s3830 = scalar_select %p3829, %s17, 1
        %s3831 = smul.addr %s3830, 32
        %s3832 = smul.addr %s3831, 8
        %s3833 = scalar_lea.vmem %s5, %s3832
      $region52: #{tpu_custom_call.1} parent=47 // pred_fallthru
        _
    $region48: #{tpu_custom_call.1} parent=5 // pred_fallthru
      _
  $region6: #{tpu_custom_call.1} parent=0 // loop_footer
    %s15 = sadd.s32 1, %s11
  $region7: #{tpu_custom_call.1} parent=0 // loop_footer_branch
    %10 = sbr.rel target = $region3
  $region8: #{tpu_custom_call.1} parent=0 // loop_exit
    _

</llo_original>
